<compile_context>
chip_gen: v7x
topology: tpu7x:2x2x1
jax: 0.10.0
libtpu: 0.0.40
codegen_flags: <defaults>
</compile_context>

<pallas_src>
import functools

import jax
import jax.numpy as jnp
from jax.experimental import pallas as pl
from jax.experimental.pallas import tpu as pltpu

LN_EPS = 1e-5             # nn.LayerNorm default
LM_TILE_V_MAX = 4096      # bf16 (H, tile_v) tile: ~6 MiB at H=768
LM_TILE_N_MAX = 512       # rows of the flattened (B*T, H) activation
LM_VMEM_LIMIT = 48 * 1024 * 1024   # < v7x's 64 MiB physical VMEM per TC
POOL_TILE_T = 256
SMALL_VMEM_LIMIT = 32 * 1024 * 1024


def _round_up(x, m):
    return (x + m - 1) // m * m


def _vocab_tiling(vocab):
    """Pick a lane-dense vocab tile and the padded vocab size it divides."""
    tile_v = min(LM_TILE_V_MAX, _round_up(vocab, 128))
    v_pad = _round_up(vocab, tile_v)
    return v_pad, tile_v


# ----------------------------------------------------------------------------
# Kernel P: sequence mean-pool  (B, T, D) -> (B, D), tiled over T
# ----------------------------------------------------------------------------
def _mean_pool_kernel(x_ref, o_ref, acc_ref, *, inv_t):
    t = pl.program_id(0)

    @pl.when(t == 0)
    def _():
        acc_ref[...] = jnp.zeros_like(acc_ref)

    acc_ref[...] += jnp.sum(x_ref[...].astype(jnp.float32), axis=1)

    @pl.when(t == pl.num_programs(0) - 1)
    def _():
        o_ref[...] = acc_ref[...] * inv_t


def seq_mean_pool(x, *, tile_t=POOL_TILE_T):
    B, T, D = x.shape
    if T <= tile_t:
        tile_t = T
        t_pad = T
    else:
        t_pad = _round_up(T, tile_t)
        if t_pad != T:
            # zero-padding does not change the sum; we divide by the real T.
            x = jnp.pad(x, ((0, 0), (0, t_pad - T), (0, 0)))

    return pl.pallas_call(
        functools.partial(_mean_pool_kernel, inv_t=1.0 / T),
        out_shape=jax.ShapeDtypeStruct((B, D), jnp.float32),
        grid=(t_pad // tile_t,),
        in_specs=[pl.BlockSpec((B, tile_t, D), lambda t: (0, t, 0))],
        out_specs=pl.BlockSpec((B, D), lambda t: (0, 0)),
        scratch_shapes=[pltpu.VMEM((B, D), jnp.float32)],
        compiler_params=pltpu.CompilerParams(
            dimension_semantics=("arbitrary",),
            vmem_limit_bytes=SMALL_VMEM_LIMIT),
    )(x)


# ----------------------------------------------------------------------------
# Kernel A: fused 3x ProjectionLayer (Linear -> ReLU -> LayerNorm)
#   output (B, 3, H) bf16, seq order: 0 = video, 1 = audio, 2 = image
# ----------------------------------------------------------------------------
def _fused_proj_kernel(img_ref, aud_ref, vid_ref,
                       wi_ref, bi_ref, gi_ref, zi_ref,
                       wa_ref, ba_ref, ga_ref, za_ref,
                       wv_ref, bv_ref, gv_ref, zv_ref,
                       o_ref):
    def proj(x_ref, w_ref, b_ref, g_ref, z_ref):
        x = x_ref[...].astype(jnp.bfloat16)                     # bf16 MXU inputs
        h = jnp.dot(x, w_ref[...], preferred_element_type=jnp.float32)
        h = h + b_ref[...]
        h = jnp.maximum(h, 0.0)                                 # ReLU
        mu = jnp.mean(h, axis=-1, keepdims=True)                # LayerNorm (f32)
        msq = jnp.mean(h * h, axis=-1, keepdims=True)           # one-pass stats
        var = msq - mu * mu
        y = (h - mu) * jax.lax.rsqrt(var + LN_EPS)
        y = y * g_ref[...] + z_ref[...]
        return y.astype(o_ref.dtype)

    # insert(0, ...) order in the reference: video, audio, image, [text].
    o_ref[:, 0, :] = proj(vid_ref, wv_ref, bv_ref, gv_ref, zv_ref)
    o_ref[:, 1, :] = proj(aud_ref, wa_ref, ba_ref, ga_ref, za_ref)
    o_ref[:, 2, :] = proj(img_ref, wi_ref, bi_ref, gi_ref, zi_ref)


def fused_projections(image_feat, audio_feat, video_feat,
                      image_proj, audio_proj, video_proj):
    B, Di = image_feat.shape
    _, Da = audio_feat.shape
    _, Dv = video_feat.shape
    H = image_proj[0].shape[1]

    def full(shape):
        nd = len(shape)
        return pl.BlockSpec(shape, lambda *_: (0,) * nd)

    proj_specs = lambda din: [full((din, H)), full((1, H)), full((1, H)),
                              full((1, H))]

    return pl.pallas_call(
        _fused_proj_kernel,
        out_shape=jax.ShapeDtypeStruct((B, 3, H), jnp.bfloat16),
        grid=(1,),
        in_specs=[full((B, Di)), full((B, Da)), full((B, Dv))]
                 + proj_specs(Di) + proj_specs(Da) + proj_specs(Dv),
        out_specs=full((B, 3, H)),
        compiler_params=pltpu.CompilerParams(
            vmem_limit_bytes=SMALL_VMEM_LIMIT),
    )(image_feat, audio_feat, video_feat,
      *image_proj, *audio_proj, *video_proj)


# ----------------------------------------------------------------------------
# Kernel B: N- and V-tiled LM head  (N, H) @ (H, Vp) -> (N, Vp)
#   wte stored pre-transposed (H, Vp) in bf16 (offline); plain MXU matmul,
#   f32 accumulation, lane-dense output tiles.
# ----------------------------------------------------------------------------
def _lm_head_kernel(x_ref, wt_ref, o_ref):
    o_ref[...] = jnp.dot(x_ref[...], wt_ref[...],
                         preferred_element_type=jnp.float32).astype(o_ref.dtype)


def lm_head(x2d, wte_t):
    N, H = x2d.shape
    Hw, Vp = wte_t.shape
    assert Hw == H

    tile_v = min(LM_TILE_V_MAX, Vp)
    assert Vp % tile_v == 0, "wte padding must match LM_TILE_V_MAX"

    tile_n = min(LM_TILE_N_MAX, _round_up(N, 8))
    n_pad = _round_up(N, tile_n)
    if n_pad != N:
        x2d = jnp.pad(x2d, ((0, n_pad - N), (0, 0)))

    cost = pl.CostEstimate(
        flops=2 * n_pad * Vp * H,
        transcendentals=0,
        bytes_accessed=Vp * H * 2 + n_pad * H * x2d.dtype.itemsize
                       + n_pad * Vp * 4)

    out = pl.pallas_call(
        _lm_head_kernel,
        out_shape=jax.ShapeDtypeStruct((n_pad, Vp), jnp.float32),
        grid=(n_pad // tile_n, Vp // tile_v),
        in_specs=[
            pl.BlockSpec((tile_n, H), lambda i, j: (i, 0)),      # activations
            pl.BlockSpec((H, tile_v), lambda i, j: (0, j)),      # wte^T tiles
        ],
        out_specs=pl.BlockSpec((tile_n, tile_v), lambda i, j: (i, j)),
        compiler_params=pltpu.CompilerParams(
            dimension_semantics=("parallel", "parallel"),        # megacore
            vmem_limit_bytes=LM_VMEM_LIMIT),
        cost_estimate=cost,
    )(x2d, wte_t)
    return out[:N]


# ----------------------------------------------------------------------------
# MultimodalLLM forward (parameters built deterministically in-script)
# ----------------------------------------------------------------------------
def multimodal_llm_forward(params, input_ids, attention_mask,
                           image_features, audio_hidden, video_hidden, *,
                           vocab):
    """Returns logits of shape (B, 3 + T_text, vocab) and the attention mask."""
    wte = params["wte"]       # (V_pad, H) bf16, zero rows beyond vocab
    wte_t = params["wte_t"]   # (H, V_pad) bf16, pre-transposed offline

    # Text embedding lookup (glue gather; GPT-2 wte).
    # TODO(synk): for large T this could become a Pallas prefetch-driven row
    # gather overlapping with the pooling kernels.
    text_embeddings = jnp.take(wte, input_ids, axis=0)          # (B, T, H) bf16

    # Encoder post-processing (pool) + projections (Pallas kernels).
    # TODO(synk): ResNet50 / Wav2Vec2 / VideoMAE backbones are pretrained black
    # boxes; their outputs are supplied as synthetic `image_features`,
    # `audio_hidden`, `video_hidden`.
    audio_pooled = seq_mean_pool(audio_hidden)                  # (B, Da) f32
    video_pooled = seq_mean_pool(video_hidden)                  # (B, Dv) f32

    mm_emb = fused_projections(image_features, audio_pooled, video_pooled,
                               params["image_proj"], params["audio_proj"],
                               params["video_proj"])            # (B, 3, H) bf16

    final_embeddings = jnp.concatenate([mm_emb, text_embeddings], axis=1)

    B = input_ids.shape[0]
    ones = jnp.ones((B, 3), dtype=attention_mask.dtype)
    final_attention_mask = jnp.concatenate([ones, attention_mask], axis=1)

    # TODO(synk): GPT-2 transformer blocks between the input embeddings and the
    # LM head are not reproduced; logits here are the tied-embedding LM-head
    # projection of the multimodal input embeddings.
    Btot, Ttot, H = final_embeddings.shape
    logits = lm_head(final_embeddings.reshape(Btot * Ttot, H), wte_t)
    logits = logits.reshape(Btot, Ttot, -1)[:, :, :vocab]       # static slice
    return logits, final_attention_mask


def make_params(key, *, hidden, vocab, image_dim, audio_dim, video_dim):
    ks = jax.random.split(key, 7)

    def proj_params(kw, kb, din, dout):
        w = (jax.random.normal(kw, (din, dout), jnp.float32) * 0.02
             ).astype(jnp.bfloat16)                              # bf16 MXU weights
        b = jax.random.normal(kb, (1, dout), jnp.float32) * 0.02
        gamma = jnp.ones((1, dout), jnp.float32)
        beta = jnp.zeros((1, dout), jnp.float32)
        return (w, b, gamma, beta)

    # Embedding table padded to the vocab tile and stored in bf16; the LM-head
    # copy is pre-transposed once offline so the kernel never transposes.
    v_pad, _ = _vocab_tiling(vocab)
    wte = jax.random.normal(ks[0], (vocab, hidden), jnp.float32) * 0.02
    wte = jnp.pad(wte, ((0, v_pad - vocab), (0, 0))).astype(jnp.bfloat16)

    return {
        "wte": wte,                       # (V_pad, H) bf16 — embedding rows
        "wte_t": wte.T,                   # (H, V_pad) bf16 — LM-head layout
        "image_proj": proj_params(ks[1], ks[2], image_dim, hidden),
        "audio_proj": proj_params(ks[3], ks[4], audio_dim, hidden),
        "video_proj": proj_params(ks[5], ks[6], video_dim, hidden),
    }


if __name__ == "__main__":
    # Small shapes consistent with the module (scaled-down GPT-2 / encoder dims).
    B, T_TEXT, HIDDEN, VOCAB = 2, 8, 128, 256
    IMAGE_DIM, AUDIO_DIM, VIDEO_DIM = 256, 128, 128
    T_AUDIO, T_VIDEO = 16, 16

    root = jax.random.PRNGKey(0)
    k_param, k_ids, k_img, k_aud, k_vid = jax.random.split(root, 5)

    params = make_params(k_param, hidden=HIDDEN, vocab=VOCAB,
                         image_dim=IMAGE_DIM, audio_dim=AUDIO_DIM,
                         video_dim=VIDEO_DIM)

    # TODO(synk): GPT-2 tokenizer not reproducible; deterministic synthetic ids.
    input_ids = jax.random.randint(k_ids, (B, T_TEXT), 0, VOCAB, jnp.int32)
    attention_mask = jnp.ones((B, T_TEXT), jnp.int32)

    image_features = jax.random.normal(k_img, (B, IMAGE_DIM), jnp.float32)
    audio_hidden = jax.random.normal(k_aud, (B, T_AUDIO, AUDIO_DIM), jnp.float32)
    video_hidden = jax.random.normal(k_vid, (B, T_VIDEO, VIDEO_DIM), jnp.float32)

    fwd = jax.jit(multimodal_llm_forward, static_argnames=("vocab",))
    logits, mask = fwd(params, input_ids, attention_mask,
                       image_features, audio_hidden, video_hidden, vocab=VOCAB)
    jax.block_until_ready((logits, mask))

    assert logits.shape == (B, 3 + T_TEXT, VOCAB), logits.shape
    assert mask.shape == (B, 3 + T_TEXT), mask.shape
    assert bool(jnp.all(jnp.isfinite(logits)))
    print("KERNEL_OK")
</pallas_src>

<mosaic_0001>
module attributes {stable_mosaic.version = 11 : i64} {
  func.func @_mean_pool_kernel(%arg0: i32, %arg1: memref<2x16x128xf32, #tpu.memory_space<vmem>>, %arg2: memref<2x128xf32, #tpu.memory_space<vmem>>, %arg3: memref<2x128xf32, #tpu.memory_space<vmem>>) attributes {dimension_semantics = [#tpu.dimension_semantics<arbitrary>], iteration_bounds = array<i64: 1>, scalar_prefetch = 0 : i64, scratch_operands = 1 : i64, tpu.core_type = #tpu.core_type<tc>, window_params = [{transform_indices = @transform_0, window_bounds = array<i64: 2, 16, 128>}, {pipeline_mode = #tpu.pipeline_mode<synchronous>, transform_indices = @transform_1, window_bounds = array<i64: 2, 128>}]} {
    %c0_i32 = arith.constant 0 : i32
    %0 = arith.cmpi eq, %arg0, %c0_i32 : i32
    %1 = arith.extui %0 : i1 to i32
    %c0_i32_0 = arith.constant 0 : i32
    %2 = arith.cmpi ne, %1, %c0_i32_0 : i32
    scf.if %2 {
      %cst_9 = arith.constant 0.000000e+00 : f32
      %11 = vector.broadcast %cst_9 : f32 to vector<2x128xf32>
      %c0_10 = arith.constant 0 : index
      %c0_11 = arith.constant 0 : index
      %12 = vector.load %arg3[%c0_10, %c0_11] : memref<2x128xf32, #tpu.memory_space<vmem>>, vector<2x128xf32>
      tpu.vector_store %arg3[%c0_10, %c0_11], %11 {strides = array<i32>} : memref<2x128xf32, #tpu.memory_space<vmem>>, vector<2x128xf32>,
    } else {
    }
    %c0 = arith.constant 0 : index
    %c0_1 = arith.constant 0 : index
    %3 = vector.load %arg3[%c0, %c0_1] : memref<2x128xf32, #tpu.memory_space<vmem>>, vector<2x128xf32>
    %c0_2 = arith.constant 0 : index
    %c0_3 = arith.constant 0 : index
    %c0_4 = arith.constant 0 : index
    %4 = vector.load %arg1[%c0_2, %c0_3, %c0_4] : memref<2x16x128xf32, #tpu.memory_space<vmem>>, vector<2x16x128xf32>
    %cst = arith.constant dense<0.000000e+00> : vector<2x128xf32>
    %5 = vector.multi_reduction <add>, %4, %cst [1] : vector<2x16x128xf32> to vector<2x128xf32>
    %6 = arith.addf %3, %5 : vector<2x128xf32>
    %c0_5 = arith.constant 0 : index
    %c0_6 = arith.constant 0 : index
    %7 = vector.load %arg3[%c0_5, %c0_6] : memref<2x128xf32, #tpu.memory_space<vmem>>, vector<2x128xf32>
    tpu.vector_store %arg3[%c0_5, %c0_6], %6 {strides = array<i32>} : memref<2x128xf32, #tpu.memory_space<vmem>>, vector<2x128xf32>,
    %c0_i32_7 = arith.constant 0 : i32
    %8 = arith.cmpi eq, %arg0, %c0_i32_7 : i32
    %9 = arith.extui %8 : i1 to i32
    %c0_i32_8 = arith.constant 0 : i32
    %10 = arith.cmpi ne, %9, %c0_i32_8 : i32
    scf.if %10 {
      %c0_9 = arith.constant 0 : index
      %c0_10 = arith.constant 0 : index
      %11 = vector.load %arg3[%c0_9, %c0_10] : memref<2x128xf32, #tpu.memory_space<vmem>>, vector<2x128xf32>
      %cst_11 = arith.constant 6.250000e-02 : f32
      %12 = vector.broadcast %cst_11 : f32 to vector<2x128xf32>
      %13 = arith.mulf %11, %12 : vector<2x128xf32>
      %c0_12 = arith.constant 0 : index
      %c0_13 = arith.constant 0 : index
      %14 = vector.load %arg2[%c0_12, %c0_13] : memref<2x128xf32, #tpu.memory_space<vmem>>, vector<2x128xf32>
      tpu.vector_store %arg2[%c0_12, %c0_13], %13 {strides = array<i32>} : memref<2x128xf32, #tpu.memory_space<vmem>>, vector<2x128xf32>,
    } else {
    }
    return
  }
  func.func @transform_0(%arg0: i32) -> (i32, i32, i32) {
    %c0_i32 = arith.constant 0 : i32
    %c0_i32_0 = arith.constant 0 : i32
    %c0_i32_1 = arith.constant 0 : i32
    return %c0_i32, %arg0, %c0_i32_0 : i32, i32, i32
  }
  func.func @transform_1(%arg0: i32) -> (i32, i32) {
    %c0_i32 = arith.constant 0 : i32
    %c0_i32_0 = arith.constant 0 : i32
    %c0_i32_1 = arith.constant 0 : i32
    return %c0_i32, %c0_i32_0 : i32, i32
  }
}

module attributes {stable_mosaic.version = 11 : i64} {
  func.func @_mean_pool_kernel(%arg0: i32, %arg1: memref<2x16x128xf32, #tpu.memory_space<vmem>>, %arg2: memref<2x128xf32, #tpu.memory_space<vmem>>, %arg3: memref<2x128xf32, #tpu.memory_space<vmem>>) attributes {dimension_semantics = [#tpu.dimension_semantics<arbitrary>], iteration_bounds = array<i64: 1>, scalar_prefetch = 0 : i64, scratch_operands = 1 : i64, tpu.core_type = #tpu.core_type<tc>, window_params = [{transform_indices = @transform_0, window_bounds = array<i64: 2, 16, 128>}, {pipeline_mode = #tpu.pipeline_mode<synchronous>, transform_indices = @transform_1, window_bounds = array<i64: 2, 128>}]} {
    %c0_i32 = arith.constant 0 : i32
    %0 = arith.cmpi eq, %arg0, %c0_i32 : i32
    %1 = arith.extui %0 : i1 to i32
    %c0_i32_0 = arith.constant 0 : i32
    %2 = arith.cmpi ne, %1, %c0_i32_0 : i32
    scf.if %2 {
      %cst_9 = arith.constant 0.000000e+00 : f32
      %11 = vector.broadcast %cst_9 : f32 to vector<2x128xf32>
      %c0_10 = arith.constant 0 : index
      %c0_11 = arith.constant 0 : index
      %12 = vector.load %arg3[%c0_10, %c0_11] : memref<2x128xf32, #tpu.memory_space<vmem>>, vector<2x128xf32>
      tpu.vector_store %arg3[%c0_10, %c0_11], %11 {strides = array<i32>} : memref<2x128xf32, #tpu.memory_space<vmem>>, vector<2x128xf32>,
    } else {
    }
    %c0 = arith.constant 0 : index
    %c0_1 = arith.constant 0 : index
    %3 = vector.load %arg3[%c0, %c0_1] : memref<2x128xf32, #tpu.memory_space<vmem>>, vector<2x128xf32>
    %c0_2 = arith.constant 0 : index
    %c0_3 = arith.constant 0 : index
    %c0_4 = arith.constant 0 : index
    %4 = vector.load %arg1[%c0_2, %c0_3, %c0_4] : memref<2x16x128xf32, #tpu.memory_space<vmem>>, vector<2x16x128xf32>
    %cst = arith.constant dense<0.000000e+00> : vector<2x128xf32>
    %5 = vector.multi_reduction <add>, %4, %cst [1] : vector<2x16x128xf32> to vector<2x128xf32>
    %6 = arith.addf %3, %5 : vector<2x128xf32>
    %c0_5 = arith.constant 0 : index
    %c0_6 = arith.constant 0 : index
    %7 = vector.load %arg3[%c0_5, %c0_6] : memref<2x128xf32, #tpu.memory_space<vmem>>, vector<2x128xf32>
    tpu.vector_store %arg3[%c0_5, %c0_6], %6 {strides = array<i32>} : memref<2x128xf32, #tpu.memory_space<vmem>>, vector<2x128xf32>,
    %c0_i32_7 = arith.constant 0 : i32
    %8 = arith.cmpi eq, %arg0, %c0_i32_7 : i32
    %9 = arith.extui %8 : i1 to i32
    %c0_i32_8 = arith.constant 0 : i32
    %10 = arith.cmpi ne, %9, %c0_i32_8 : i32
    scf.if %10 {
      %c0_9 = arith.constant 0 : index
      %c0_10 = arith.constant 0 : index
      %11 = vector.load %arg3[%c0_9, %c0_10] : memref<2x128xf32, #tpu.memory_space<vmem>>, vector<2x128xf32>
      %cst_11 = arith.constant 6.250000e-02 : f32
      %12 = vector.broadcast %cst_11 : f32 to vector<2x128xf32>
      %13 = arith.mulf %11, %12 : vector<2x128xf32>
      %c0_12 = arith.constant 0 : index
      %c0_13 = arith.constant 0 : index
      %14 = vector.load %arg2[%c0_12, %c0_13] : memref<2x128xf32, #tpu.memory_space<vmem>>, vector<2x128xf32>
      tpu.vector_store %arg2[%c0_12, %c0_13], %13 {strides = array<i32>} : memref<2x128xf32, #tpu.memory_space<vmem>>, vector<2x128xf32>,
    } else {
    }
    return
  }
  func.func @transform_0(%arg0: i32) -> (i32, i32, i32) {
    %c0_i32 = arith.constant 0 : i32
    %c0_i32_0 = arith.constant 0 : i32
    %c0_i32_1 = arith.constant 0 : i32
    return %c0_i32, %arg0, %c0_i32_0 : i32, i32, i32
  }
  func.func @transform_1(%arg0: i32) -> (i32, i32) {
    %c0_i32 = arith.constant 0 : i32
    %c0_i32_0 = arith.constant 0 : i32
    %c0_i32_1 = arith.constant 0 : i32
    return %c0_i32, %c0_i32_0 : i32, i32
  }
}

module attributes {stable_mosaic.version = 11 : i64} {
  func.func @_fused_proj_kernel(%arg0: i32, %arg1: memref<2x256xf32, #tpu.memory_space<vmem>>, %arg2: memref<2x128xf32, #tpu.memory_space<vmem>>, %arg3: memref<2x128xf32, #tpu.memory_space<vmem>>, %arg4: memref<256x128xbf16, #tpu.memory_space<vmem>>, %arg5: memref<1x128xf32, #tpu.memory_space<vmem>>, %arg6: memref<1x128xf32, #tpu.memory_space<vmem>>, %arg7: memref<1x128xf32, #tpu.memory_space<vmem>>, %arg8: memref<128x128xbf16, #tpu.memory_space<vmem>>, %arg9: memref<1x128xf32, #tpu.memory_space<vmem>>, %arg10: memref<1x128xf32, #tpu.memory_space<vmem>>, %arg11: memref<1x128xf32, #tpu.memory_space<vmem>>, %arg12: memref<128x128xbf16, #tpu.memory_space<vmem>>, %arg13: memref<1x128xf32, #tpu.memory_space<vmem>>, %arg14: memref<1x128xf32, #tpu.memory_space<vmem>>, %arg15: memref<1x128xf32, #tpu.memory_space<vmem>>, %arg16: memref<2x3x128xbf16, #tpu.memory_space<vmem>>) attributes {dimension_semantics = [#tpu.dimension_semantics<arbitrary>], iteration_bounds = array<i64: 1>, scalar_prefetch = 0 : i64, scratch_operands = 0 : i64, tpu.core_type = #tpu.core_type<tc>, window_params = [{pipeline_mode = #tpu.pipeline_mode<synchronous>, transform_indices = @transform_0, window_bounds = array<i64: 2, 256>}, {pipeline_mode = #tpu.pipeline_mode<synchronous>, transform_indices = @transform_1, window_bounds = array<i64: 2, 128>}, {pipeline_mode = #tpu.pipeline_mode<synchronous>, transform_indices = @transform_2, window_bounds = array<i64: 2, 128>}, {pipeline_mode = #tpu.pipeline_mode<synchronous>, transform_indices = @transform_3, window_bounds = array<i64: 256, 128>}, {pipeline_mode = #tpu.pipeline_mode<synchronous>, transform_indices = @transform_4, window_bounds = array<i64: 1, 128>}, {pipeline_mode = #tpu.pipeline_mode<synchronous>, transform_indices = @transform_5, window_bounds = array<i64: 1, 128>}, {pipeline_mode = #tpu.pipeline_mode<synchronous>, transform_indices = @transform_6, window_bounds = array<i64: 1, 128>}, {pipeline_mode = #tpu.pipeline_mode<synchronous>, transform_indices = @transform_7, window_bounds = array<i64: 128, 128>}, {pipeline_mode = #tpu.pipeline_mode<synchronous>, transform_indices = @transform_8, window_bounds = array<i64: 1, 128>}, {pipeline_mode = #tpu.pipeline_mode<synchronous>, transform_indices = @transform_9, window_bounds = array<i64: 1, 128>}, {pipeline_mode = #tpu.pipeline_mode<synchronous>, transform_indices = @transform_10, window_bounds = array<i64: 1, 128>}, {pipeline_mode = #tpu.pipeline_mode<synchronous>, transform_indices = @transform_11, window_bounds = array<i64: 128, 128>}, {pipeline_mode = #tpu.pipeline_mode<synchronous>, transform_indices = @transform_12, window_bounds = array<i64: 1, 128>}, {pipeline_mode = #tpu.pipeline_mode<synchronous>, transform_indices = @transform_13, window_bounds = array<i64: 1, 128>}, {pipeline_mode = #tpu.pipeline_mode<synchronous>, transform_indices = @transform_14, window_bounds = array<i64: 1, 128>}, {pipeline_mode = #tpu.pipeline_mode<synchronous>, transform_indices = @transform_15, window_bounds = array<i64: 2, 3, 128>}]} {
    %c0 = arith.constant 0 : index
    %c0_0 = arith.constant 0 : index
    %0 = vector.load %arg3[%c0, %c0_0] : memref<2x128xf32, #tpu.memory_space<vmem>>, vector<2x128xf32>
    %1 = arith.truncf %0 : vector<2x128xf32> to vector<2x128xbf16>
    %c0_1 = arith.constant 0 : index
    %c0_2 = arith.constant 0 : index
    %2 = vector.load %arg12[%c0_1, %c0_2] : memref<128x128xbf16, #tpu.memory_space<vmem>>, vector<128x128xbf16>
    %cst = arith.constant dense<0.000000e+00> : vector<2x128xf32>
    %3 = tpu.matmul %1, %2, %cst {dimension_numbers = #tpu.dot_dimension_numbers<[1], [0], [0], [1], [0, 0, 1, 1], [], []>} : vector<2x128xbf16>, vector<128x128xbf16>, vector<2x128xf32> -> vector<2x128xf32>
    %c0_3 = arith.constant 0 : index
    %c0_4 = arith.constant 0 : index
    %4 = vector.load %arg13[%c0_3, %c0_4] : memref<1x128xf32, #tpu.memory_space<vmem>>, vector<1x128xf32>
    %5 = vector.broadcast %4 : vector<1x128xf32> to vector<2x128xf32>
    %6 = arith.addf %3, %5 : vector<2x128xf32>
    %cst_5 = arith.constant 0.000000e+00 : f32
    %7 = vector.broadcast %cst_5 : f32 to vector<2x128xf32>
    %8 = arith.maximumf %6, %7 : vector<2x128xf32>
    %cst_6 = arith.constant dense<0.000000e+00> : vector<2xf32>
    %9 = vector.multi_reduction <add>, %8, %cst_6 [1] : vector<2x128xf32> to vector<2xf32>
    %10 = vector.shape_cast %9 : vector<2xf32> to vector<2x1xf32>
    %cst_7 = arith.constant 1.280000e+02 : f32
    %11 = vector.broadcast %cst_7 : f32 to vector<2x1xf32>
    %12 = arith.divf %10, %11 : vector<2x1xf32>
    %13 = arith.mulf %8, %8 : vector<2x128xf32>
    %cst_8 = arith.constant dense<0.000000e+00> : vector<2xf32>
    %14 = vector.multi_reduction <add>, %13, %cst_8 [1] : vector<2x128xf32> to vector<2xf32>
    %15 = vector.shape_cast %14 : vector<2xf32> to vector<2x1xf32>
    %cst_9 = arith.constant 1.280000e+02 : f32
    %16 = vector.broadcast %cst_9 : f32 to vector<2x1xf32>
    %17 = arith.divf %15, %16 : vector<2x1xf32>
    %18 = arith.mulf %12, %12 : vector<2x1xf32>
    %19 = arith.subf %17, %18 : vector<2x1xf32>
    %20 = vector.broadcast %12 : vector<2x1xf32> to vector<2x128xf32>
    %21 = arith.subf %8, %20 : vector<2x128xf32>
    %cst_10 = arith.constant 9.99999974E-6 : f32
    %22 = vector.broadcast %cst_10 : f32 to vector<2x1xf32>
    %23 = arith.addf %19, %22 : vector<2x1xf32>
    %24 = math.rsqrt %23 : vector<2x1xf32>
    %25 = vector.broadcast %24 : vector<2x1xf32> to vector<2x128xf32>
    %26 = arith.mulf %21, %25 : vector<2x128xf32>
    %c0_11 = arith.constant 0 : index
    %c0_12 = arith.constant 0 : index
    %27 = vector.load %arg14[%c0_11, %c0_12] : memref<1x128xf32, #tpu.memory_space<vmem>>, vector<1x128xf32>
    %28 = vector.broadcast %27 : vector<1x128xf32> to vector<2x128xf32>
    %29 = arith.mulf %26, %28 : vector<2x128xf32>
    %c0_13 = arith.constant 0 : index
    %c0_14 = arith.constant 0 : index
    %30 = vector.load %arg15[%c0_13, %c0_14] : memref<1x128xf32, #tpu.memory_space<vmem>>, vector<1x128xf32>
    %31 = vector.broadcast %30 : vector<1x128xf32> to vector<2x128xf32>
    %32 = arith.addf %29, %31 : vector<2x128xf32>
    %33 = arith.truncf %32 : vector<2x128xf32> to vector<2x128xbf16>
    %c0_15 = arith.constant 0 : index
    %c0_16 = arith.constant 0 : index
    %c0_17 = arith.constant 0 : index
    %34 = vector.load %arg16[%c0_15, %c0_16, %c0_17] : memref<2x3x128xbf16, #tpu.memory_space<vmem>>, vector<2x1x128xbf16>
    %35 = vector.shape_cast %34 : vector<2x1x128xbf16> to vector<2x128xbf16>
    %36 = vector.shape_cast %33 : vector<2x128xbf16> to vector<2x1x128xbf16>
    tpu.vector_store %arg16[%c0_15, %c0_16, %c0_17], %36 {strides = array<i32>} : memref<2x3x128xbf16, #tpu.memory_space<vmem>>, vector<2x1x128xbf16>,
    %c0_18 = arith.constant 0 : index
    %c0_19 = arith.constant 0 : index
    %37 = vector.load %arg2[%c0_18, %c0_19] : memref<2x128xf32, #tpu.memory_space<vmem>>, vector<2x128xf32>
    %38 = arith.truncf %37 : vector<2x128xf32> to vector<2x128xbf16>
    %c0_20 = arith.constant 0 : index
    %c0_21 = arith.constant 0 : index
    %39 = vector.load %arg8[%c0_20, %c0_21] : memref<128x128xbf16, #tpu.memory_space<vmem>>, vector<128x128xbf16>
    %cst_22 = arith.constant dense<0.000000e+00> : vector<2x128xf32>
    %40 = tpu.matmul %38, %39, %cst_22 {dimension_numbers = #tpu.dot_dimension_numbers<[1], [0], [0], [1], [0, 0, 1, 1], [], []>} : vector<2x128xbf16>, vector<128x128xbf16>, vector<2x128xf32> -> vector<2x128xf32>
    %c0_23 = arith.constant 0 : index
    %c0_24 = arith.constant 0 : index
    %41 = vector.load %arg9[%c0_23, %c0_24] : memref<1x128xf32, #tpu.memory_space<vmem>>, vector<1x128xf32>
    %42 = vector.broadcast %41 : vector<1x128xf32> to vector<2x128xf32>
    %43 = arith.addf %40, %42 : vector<2x128xf32>
    %cst_25 = arith.constant 0.000000e+00 : f32
    %44 = vector.broadcast %cst_25 : f32 to vector<2x128xf32>
    %45 = arith.maximumf %43, %44 : vector<2x128xf32>
    %cst_26 = arith.constant dense<0.000000e+00> : vector<2xf32>
    %46 = vector.multi_reduction <add>, %45, %cst_26 [1] : vector<2x128xf32> to vector<2xf32>
    %47 = vector.shape_cast %46 : vector<2xf32> to vector<2x1xf32>
    %cst_27 = arith.constant 1.280000e+02 : f32
    %48 = vector.broadcast %cst_27 : f32 to vector<2x1xf32>
    %49 = arith.divf %47, %48 : vector<2x1xf32>
    %50 = arith.mulf %45, %45 : vector<2x128xf32>
    %cst_28 = arith.constant dense<0.000000e+00> : vector<2xf32>
    %51 = vector.multi_reduction <add>, %50, %cst_28 [1] : vector<2x128xf32> to vector<2xf32>
    %52 = vector.shape_cast %51 : vector<2xf32> to vector<2x1xf32>
    %cst_29 = arith.constant 1.280000e+02 : f32
    %53 = vector.broadcast %cst_29 : f32 to vector<2x1xf32>
    %54 = arith.divf %52, %53 : vector<2x1xf32>
    %55 = arith.mulf %49, %49 : vector<2x1xf32>
    %56 = arith.subf %54, %55 : vector<2x1xf32>
    %57 = vector.broadcast %49 : vector<2x1xf32> to vector<2x128xf32>
    %58 = arith.subf %45, %57 : vector<2x128xf32>
    %cst_30 = arith.constant 9.99999974E-6 : f32
    %59 = vector.broadcast %cst_30 : f32 to vector<2x1xf32>
    %60 = arith.addf %56, %59 : vector<2x1xf32>
    %61 = math.rsqrt %60 : vector<2x1xf32>
    %62 = vector.broadcast %61 : vector<2x1xf32> to vector<2x128xf32>
    %63 = arith.mulf %58, %62 : vector<2x128xf32>
    %c0_31 = arith.constant 0 : index
    %c0_32 = arith.constant 0 : index
    %64 = vector.load %arg10[%c0_31, %c0_32] : memref<1x128xf32, #tpu.memory_space<vmem>>, vector<1x128xf32>
    %65 = vector.broadcast %64 : vector<1x128xf32> to vector<2x128xf32>
    %66 = arith.mulf %63, %65 : vector<2x128xf32>
    %c0_33 = arith.constant 0 : index
    %c0_34 = arith.constant 0 : index
    %67 = vector.load %arg11[%c0_33, %c0_34] : memref<1x128xf32, #tpu.memory_space<vmem>>, vector<1x128xf32>
    %68 = vector.broadcast %67 : vector<1x128xf32> to vector<2x128xf32>
    %69 = arith.addf %66, %68 : vector<2x128xf32>
    %70 = arith.truncf %69 : vector<2x128xf32> to vector<2x128xbf16>
    %c0_35 = arith.constant 0 : index
    %c1 = arith.constant 1 : index
    %c0_36 = arith.constant 0 : index
    %71 = vector.load %arg16[%c0_35, %c1, %c0_36] : memref<2x3x128xbf16, #tpu.memory_space<vmem>>, vector<2x1x128xbf16>
    %72 = vector.shape_cast %71 : vector<2x1x128xbf16> to vector<2x128xbf16>
    %73 = vector.shape_cast %70 : vector<2x128xbf16> to vector<2x1x128xbf16>
    tpu.vector_store %arg16[%c0_35, %c1, %c0_36], %73 {strides = array<i32>} : memref<2x3x128xbf16, #tpu.memory_space<vmem>>, vector<2x1x128xbf16>,
    %c0_37 = arith.constant 0 : index
    %c0_38 = arith.constant 0 : index
    %74 = vector.load %arg1[%c0_37, %c0_38] : memref<2x256xf32, #tpu.memory_space<vmem>>, vector<2x256xf32>
    %75 = arith.truncf %74 : vector<2x256xf32> to vector<2x256xbf16>
    %c0_39 = arith.constant 0 : index
    %c0_40 = arith.constant 0 : index
    %76 = vector.load %arg4[%c0_39, %c0_40] : memref<256x128xbf16, #tpu.memory_space<vmem>>, vector<256x128xbf16>
    %cst_41 = arith.constant dense<0.000000e+00> : vector<2x128xf32>
    %77 = tpu.matmul %75, %76, %cst_41 {dimension_numbers = #tpu.dot_dimension_numbers<[1], [0], [0], [1], [0, 0, 1, 1], [], []>} : vector<2x256xbf16>, vector<256x128xbf16>, vector<2x128xf32> -> vector<2x128xf32>
    %c0_42 = arith.constant 0 : index
    %c0_43 = arith.constant 0 : index
    %78 = vector.load %arg5[%c0_42, %c0_43] : memref<1x128xf32, #tpu.memory_space<vmem>>, vector<1x128xf32>
    %79 = vector.broadcast %78 : vector<1x128xf32> to vector<2x128xf32>
    %80 = arith.addf %77, %79 : vector<2x128xf32>
    %cst_44 = arith.constant 0.000000e+00 : f32
    %81 = vector.broadcast %cst_44 : f32 to vector<2x128xf32>
    %82 = arith.maximumf %80, %81 : vector<2x128xf32>
    %cst_45 = arith.constant dense<0.000000e+00> : vector<2xf32>
    %83 = vector.multi_reduction <add>, %82, %cst_45 [1] : vector<2x128xf32> to vector<2xf32>
    %84 = vector.shape_cast %83 : vector<2xf32> to vector<2x1xf32>
    %cst_46 = arith.constant 1.280000e+02 : f32
    %85 = vector.broadcast %cst_46 : f32 to vector<2x1xf32>
    %86 = arith.divf %84, %85 : vector<2x1xf32>
    %87 = arith.mulf %82, %82 : vector<2x128xf32>
    %cst_47 = arith.constant dense<0.000000e+00> : vector<2xf32>
    %88 = vector.multi_reduction <add>, %87, %cst_47 [1] : vector<2x128xf32> to vector<2xf32>
    %89 = vector.shape_cast %88 : vector<2xf32> to vector<2x1xf32>
    %cst_48 = arith.constant 1.280000e+02 : f32
    %90 = vector.broadcast %cst_48 : f32 to vector<2x1xf32>
    %91 = arith.divf %89, %90 : vector<2x1xf32>
    %92 = arith.mulf %86, %86 : vector<2x1xf32>
    %93 = arith.subf %91, %92 : vector<2x1xf32>
    %94 = vector.broadcast %86 : vector<2x1xf32> to vector<2x128xf32>
    %95 = arith.subf %82, %94 : vector<2x128xf32>
    %cst_49 = arith.constant 9.99999974E-6 : f32
    %96 = vector.broadcast %cst_49 : f32 to vector<2x1xf32>
    %97 = arith.addf %93, %96 : vector<2x1xf32>
    %98 = math.rsqrt %97 : vector<2x1xf32>
    %99 = vector.broadcast %98 : vector<2x1xf32> to vector<2x128xf32>
    %100 = arith.mulf %95, %99 : vector<2x128xf32>
    %c0_50 = arith.constant 0 : index
    %c0_51 = arith.constant 0 : index
    %101 = vector.load %arg6[%c0_50, %c0_51] : memref<1x128xf32, #tpu.memory_space<vmem>>, vector<1x128xf32>
    %102 = vector.broadcast %101 : vector<1x128xf32> to vector<2x128xf32>
    %103 = arith.mulf %100, %102 : vector<2x128xf32>
    %c0_52 = arith.constant 0 : index
    %c0_53 = arith.constant 0 : index
    %104 = vector.load %arg7[%c0_52, %c0_53] : memref<1x128xf32, #tpu.memory_space<vmem>>, vector<1x128xf32>
    %105 = vector.broadcast %104 : vector<1x128xf32> to vector<2x128xf32>
    %106 = arith.addf %103, %105 : vector<2x128xf32>
    %107 = arith.truncf %106 : vector<2x128xf32> to vector<2x128xbf16>
    %c0_54 = arith.constant 0 : index
    %c2 = arith.constant 2 : index
    %c0_55 = arith.constant 0 : index
    %108 = vector.load %arg16[%c0_54, %c2, %c0_55] : memref<2x3x128xbf16, #tpu.memory_space<vmem>>, vector<2x1x128xbf16>
    %109 = vector.shape_cast %108 : vector<2x1x128xbf16> to vector<2x128xbf16>
    %110 = vector.shape_cast %107 : vector<2x128xbf16> to vector<2x1x128xbf16>
    tpu.vector_store %arg16[%c0_54, %c2, %c0_55], %110 {strides = array<i32>} : memref<2x3x128xbf16, #tpu.memory_space<vmem>>, vector<2x1x128xbf16>,
    return
  }
  func.func @transform_0(%arg0: i32) -> (i32, i32) {
    %c0_i32 = arith.constant 0 : i32
    %c0_i32_0 = arith.constant 0 : i32
    %c0_i32_1 = arith.constant 0 : i32
    return %c0_i32, %c0_i32_0 : i32, i32
  }
  func.func @transform_1(%arg0: i32) -> (i32, i32) {
    %c0_i32 = arith.constant 0 : i32
    %c0_i32_0 = arith.constant 0 : i32
    %c0_i32_1 = arith.constant 0 : i32
    return %c0_i32, %c0_i32_0 : i32, i32
  }
  func.func @transform_2(%arg0: i32) -> (i32, i32) {
    %c0_i32 = arith.constant 0 : i32
    %c0_i32_0 = arith.constant 0 : i32
    %c0_i32_1 = arith.constant 0 : i32
    return %c0_i32, %c0_i32_0 : i32, i32
  }
  func.func @transform_3(%arg0: i32) -> (i32, i32) {
    %c0_i32 = arith.constant 0 : i32
    %c0_i32_0 = arith.constant 0 : i32
    %c0_i32_1 = arith.constant 0 : i32
    return %c0_i32, %c0_i32_0 : i32, i32
  }
  func.func @transform_4(%arg0: i32) -> (i32, i32) {
    %c0_i32 = arith.constant 0 : i32
    %c0_i32_0 = arith.constant 0 : i32
    %c0_i32_1 = arith.constant 0 : i32
    return %c0_i32, %c0_i32_0 : i32, i32
  }
  func.func @transform_5(%arg0: i32) -> (i32, i32) {
    %c0_i32 = arith.constant 0 : i32
    %c0_i32_0 = arith.constant 0 : i32
    %c0_i32_1 = arith.constant 0 : i32
    return %c0_i32, %c0_i32_0 : i32, i32
  }
  func.func @transform_6(%arg0: i32) -> (i32, i32) {
    %c0_i32 = arith.constant 0 : i32
    %c0_i32_0 = arith.constant 0 : i32
    %c0_i32_1 = arith.constant 0 : i32
    return %c0_i32, %c0_i32_0 : i32, i32
  }
  func.func @transform_7(%arg0: i32) -> (i32, i32) {
    %c0_i32 = arith.constant 0 : i32
    %c0_i32_0 = arith.constant 0 : i32
    %c0_i32_1 = arith.constant 0 : i32
    return %c0_i32, %c0_i32_0 : i32, i32
  }
  func.func @transform_8(%arg0: i32) -> (i32, i32) {
    %c0_i32 = arith.constant 0 : i32
    %c0_i32_0 = arith.constant 0 : i32
    %c0_i32_1 = arith.constant 0 : i32
    return %c0_i32, %c0_i32_0 : i32, i32
  }
  func.func @transform_9(%arg0: i32) -> (i32, i32) {
    %c0_i32 = arith.constant 0 : i32
    %c0_i32_0 = arith.constant 0 : i32
    %c0_i32_1 = arith.constant 0 : i32
    return %c0_i32, %c0_i32_0 : i32, i32
  }
  func.func @transform_10(%arg0: i32) -> (i32, i32) {
    %c0_i32 = arith.constant 0 : i32
    %c0_i32_0 = arith.constant 0 : i32
    %c0_i32_1 = arith.constant 0 : i32
    return %c0_i32, %c0_i32_0 : i32, i32
  }
  func.func @transform_11(%arg0: i32) -> (i32, i32) {
    %c0_i32 = arith.constant 0 : i32
    %c0_i32_0 = arith.constant 0 : i32
    %c0_i32_1 = arith.constant 0 : i32
    return %c0_i32, %c0_i32_0 : i32, i32
  }
  func.func @transform_12(%arg0: i32) -> (i32, i32) {
    %c0_i32 = arith.constant 0 : i32
    %c0_i32_0 = arith.constant 0 : i32
    %c0_i32_1 = arith.constant 0 : i32
    return %c0_i32, %c0_i32_0 : i32, i32
  }
  func.func @transform_13(%arg0: i32) -> (i32, i32) {
    %c0_i32 = arith.constant 0 : i32
    %c0_i32_0 = arith.constant 0 : i32
    %c0_i32_1 = arith.constant 0 : i32
    return %c0_i32, %c0_i32_0 : i32, i32
  }
  func.func @transform_14(%arg0: i32) -> (i32, i32) {
    %c0_i32 = arith.constant 0 : i32
    %c0_i32_0 = arith.constant 0 : i32
    %c0_i32_1 = arith.constant 0 : i32
    return %c0_i32, %c0_i32_0 : i32, i32
  }
  func.func @transform_15(%arg0: i32) -> (i32, i32, i32) {
    %c0_i32 = arith.constant 0 : i32
    %c0_i32_0 = arith.constant 0 : i32
    %c0_i32_1 = arith.constant 0 : i32
    %c0_i32_2 = arith.constant 0 : i32
    return %c0_i32, %c0_i32_0, %c0_i32_1 : i32, i32, i32
  }
}

module attributes {stable_mosaic.version = 11 : i64} {
  func.func @_lm_head_kernel(%arg0: i32, %arg1: i32, %arg2: memref<24x128xbf16, #tpu.memory_space<vmem>>, %arg3: memref<128x256xbf16, #tpu.memory_space<vmem>>, %arg4: memref<24x256xf32, #tpu.memory_space<vmem>>) attributes {dimension_semantics = [#tpu.dimension_semantics<parallel>, #tpu.dimension_semantics<parallel>], iteration_bounds = array<i64: 1, 1>, scalar_prefetch = 0 : i64, scratch_operands = 0 : i64, tpu.core_type = #tpu.core_type<tc>, window_params = [{transform_indices = @transform_0, window_bounds = array<i64: 24, 128>}, {transform_indices = @transform_1, window_bounds = array<i64: 128, 256>}, {transform_indices = @transform_2, window_bounds = array<i64: 24, 256>}]} {
    %c0 = arith.constant 0 : index
    %c0_0 = arith.constant 0 : index
    %0 = vector.load %arg2[%c0, %c0_0] : memref<24x128xbf16, #tpu.memory_space<vmem>>, vector<24x128xbf16>
    %c0_1 = arith.constant 0 : index
    %c0_2 = arith.constant 0 : index
    %1 = vector.load %arg3[%c0_1, %c0_2] : memref<128x256xbf16, #tpu.memory_space<vmem>>, vector<128x256xbf16>
    %cst = arith.constant dense<0.000000e+00> : vector<24x256xf32>
    %2 = tpu.matmul %0, %1, %cst {dimension_numbers = #tpu.dot_dimension_numbers<[1], [0], [0], [1], [0, 0, 1, 1], [], []>} : vector<24x128xbf16>, vector<128x256xbf16>, vector<24x256xf32> -> vector<24x256xf32>
    %c0_3 = arith.constant 0 : index
    %c0_4 = arith.constant 0 : index
    %3 = vector.load %arg4[%c0_3, %c0_4] : memref<24x256xf32, #tpu.memory_space<vmem>>, vector<24x256xf32>
    tpu.vector_store %arg4[%c0_3, %c0_4], %2 {strides = array<i32>} : memref<24x256xf32, #tpu.memory_space<vmem>>, vector<24x256xf32>,
    return
  }
  func.func @transform_0(%arg0: i32, %arg1: i32) -> (i32, i32) {
    %c0_i32 = arith.constant 0 : i32
    %c0_i32_0 = arith.constant 0 : i32
    return %arg0, %c0_i32 : i32, i32
  }
  func.func @transform_1(%arg0: i32, %arg1: i32) -> (i32, i32) {
    %c0_i32 = arith.constant 0 : i32
    %c0_i32_0 = arith.constant 0 : i32
    return %c0_i32, %arg1 : i32, i32
  }
  func.func @transform_2(%arg0: i32, %arg1: i32) -> (i32, i32) {
    %c0_i32 = arith.constant 0 : i32
    return %arg0, %arg1 : i32, i32
  }
}

</mosaic_0001>

<llo_original>
// kernel: multimodal_llm_forward.5
$region0: #{multimodal_llm_forward.5}
  #allocation0 [shape = 'u32[]', space=smem, size = 0x4, offset = 0x4, fixed_abs, tag = 'smem constant byte address 0x4 - core index']
  #allocation1 [shape = 'u32[144,128]{1,0:T(1,128)}', space=vmem, size = 0x12000, scoped, tag = 'internal scratch']
  #allocation2 [shape = 'f32[2,128]{1,0:T(2,128)}', space=vmem, size = 0x400, scoped, tag = 'scratch operand']
  %s0 = inlined_call_operand.hbm [shape: f32[2,16,128], index: 0, kind: input, shape index: {}]
  %s1 = inlined_call_operand.vmem [shape: f32[2,128], index: 1, kind: output, shape index: {}]
  %s2 = sld [smem:[#allocation0]]
  $region26: #{multimodal_llm_forward.5} parent=0
    _
  %s4 = ssub.s32 1, %s2
  %s5 = scalar_select 0, %s4, %s2
  $region1: #{multimodal_llm_forward.5} parent=0
    #allocation3 [shape = 'u8[16384]{0}', space=vmem, size = 0x4000, scoped, tag = 'input window, operand 0, single buffered']
    #allocation4 [shape = 's32[1]{0}', space=sflag, size = 0x4, scoped, tag = 'scoped memory for multimodal_llm_forward.5']
    %6 = vsyncpa [#allocation4], 0
    // Predicated region
    $region2: #{multimodal_llm_forward.5} parent=1 // pred_check
      _
    $region3: #{multimodal_llm_forward.5} parent=1 // pred_check_branch
      %8 = sbr.rel (0) target = $region5
    $region4: #{multimodal_llm_forward.5} parent=1 // pred_region
      %s10 = ssub.s32 512, 512
      %11 = vsyncadd [#allocation4], %s10
      %s12 = sshll.u32 [#allocation3], 4
      %s13 = int_to_ptr.vmem [resolvable:$true] %s12
      %18 = dma.hbm_to_vmem [thread:$0]  %s0, 512, %s13, [#allocation4], 128, 128, 8
    $region5: #{multimodal_llm_forward.5} parent=1 // pred_fallthru
      _
    // Predicated region
    $region6: #{multimodal_llm_forward.5} parent=1 // pred_check
      _
    $region7: #{multimodal_llm_forward.5} parent=1 // pred_check_branch
      %20 = sbr.rel (0) target = $region9
    $region8: #{multimodal_llm_forward.5} parent=1 // pred_region
      %21 = dma.done [#allocation4], 512
    $region9: #{multimodal_llm_forward.5} parent=1 // pred_fallthru
      _
    %p22 = scmp.eq.s32.totalorder 0, 0
    // Predicated region
    $region10: #{multimodal_llm_forward.5} parent=1 // pred_check
      %p23 = pneg %p22
    $region11: #{multimodal_llm_forward.5} parent=1 // pred_check_branch
      %25 = sbr.rel (%p23) target = $region13
    $region12: #{multimodal_llm_forward.5} parent=1 // pred_region
      %26 = vst [vmem:[#allocation2] sm:$0x3] 0.0
    $region13: #{multimodal_llm_forward.5} parent=1 // pred_fallthru
      _
    %v27 = vld [vmem:[#allocation2] sm:$0x3]
    %v28 = vld [vmem:[#allocation3] sm:$0xff]
    %v29 = vld [vmem:[#allocation3 + $0x8] sm:$0xff]
    %v30 = vld [vmem:[#allocation3 + $0x10] sm:$0xff]
    %v31 = vld [vmem:[#allocation3 + $0x18] sm:$0xff]
    %v32 = vadd.f32 %v28, %v29
    %v33 = vrot.slane %v32, 4
    %v34 = vadd.f32 %v32, %v33
    %v35 = vrot.slane %v34, 2
    %v36 = vadd.f32 %v34, %v35
    %v37 = vrot.slane %v36, 1
    %v38 = vadd.f32 %v36, %v37
    %v39 = vadd.f32 %v30, %v31
    %v40 = vrot.slane %v39, 4
    %v41 = vadd.f32 %v39, %v40
    %v42 = vrot.slane %v41, 2
    %v43 = vadd.f32 %v41, %v42
    %v44 = vrot.slane %v43, 1
    %v45 = vadd.f32 %v43, %v44
    %vm48 = vcmask 1041409
    %v49 = vsel %vm48, %v45, %v38
    %v51 = vadd.f32 %v27, %v49
    %52 = vst [vmem:[#allocation2] sm:$0x3] %v51
    // Predicated region
    $region14: #{multimodal_llm_forward.5} parent=1 // pred_check
      %p53 = pneg %p22
    $region15: #{multimodal_llm_forward.5} parent=1 // pred_check_branch
      %55 = sbr.rel (%p53) target = $region17
    $region16: #{multimodal_llm_forward.5} parent=1 // pred_region
      %v56 = vld [vmem:[#allocation2] sm:$0x3]
      %v57 = vmul.f32 %v56, 0.0625
      %58 = vst [vmem:[%s1] sm:$0x3] %v57
    $region17: #{multimodal_llm_forward.5} parent=1 // pred_fallthru
      _
    // Predicated region
    $region18: #{multimodal_llm_forward.5} parent=1 // pred_check
      _
    $region19: #{multimodal_llm_forward.5} parent=1 // pred_check_branch
      %60 = sbr.rel (0) target = $region21
    $region20: #{multimodal_llm_forward.5} parent=1 // pred_region
      _
    $region21: #{multimodal_llm_forward.5} parent=1 // pred_fallthru
      _
    // Predicated region
    $region22: #{multimodal_llm_forward.5} parent=1 // pred_check
      _
    $region23: #{multimodal_llm_forward.5} parent=1 // pred_check_branch
      %62 = sbr.rel (0) target = $region25
    $region24: #{multimodal_llm_forward.5} parent=1 // pred_region
      _
    $region25: #{multimodal_llm_forward.5} parent=1 // pred_fallthru
      _
    %63 = vsyncpa [#allocation4], 1

// kernel: multimodal_llm_forward.4
$region0: #{multimodal_llm_forward.4}
  #allocation0 [shape = 'u32[]', space=smem, size = 0x4, offset = 0x4, fixed_abs, tag = 'smem constant byte address 0x4 - core index']
  #allocation1 [shape = 'u32[144,128]{1,0:T(1,128)}', space=vmem, size = 0x12000, scoped, tag = 'internal scratch']
  #allocation2 [shape = 'f32[2,128]{1,0:T(2,128)}', space=vmem, size = 0x400, scoped, tag = 'scratch operand']
  %s0 = inlined_call_operand.vmem [shape: f32[2,16,128], index: 0, kind: input, shape index: {}]
  %s1 = inlined_call_operand.vmem [shape: f32[2,128], index: 1, kind: output, shape index: {}]
  %s2 = sld [smem:[#allocation0]]
  $region22: #{multimodal_llm_forward.4} parent=0
    _
  %s4 = ssub.s32 1, %s2
  %s5 = scalar_select 0, %s4, %s2
  // Predicated region
  $region2: #{multimodal_llm_forward.4} parent=0 // pred_check
    _
  $region3: #{multimodal_llm_forward.4} parent=0 // pred_check_branch
    %7 = sbr.rel (0) target = $region5
  $region4: #{multimodal_llm_forward.4} parent=0 // pred_region
    _
  $region5: #{multimodal_llm_forward.4} parent=0 // pred_fallthru
    _
  %p8 = scmp.eq.s32.totalorder 0, 0
  // Predicated region
  $region6: #{multimodal_llm_forward.4} parent=0 // pred_check
    %p9 = pneg %p8
  $region7: #{multimodal_llm_forward.4} parent=0 // pred_check_branch
    %11 = sbr.rel (%p9) target = $region9
  $region8: #{multimodal_llm_forward.4} parent=0 // pred_region
    %12 = vst [vmem:[#allocation2] sm:$0x3] 0.0
  $region9: #{multimodal_llm_forward.4} parent=0 // pred_fallthru
    _
  %v13 = vld [vmem:[#allocation2] sm:$0x3]
  %v14 = vld [vmem:[%s0] sm:$0xff]
  %v15 = vld [vmem:[%s0 + $0x8] sm:$0xff]
  %v16 = vld [vmem:[%s0 + $0x10] sm:$0xff]
  %v17 = vld [vmem:[%s0 + $0x18] sm:$0xff]
  %v18 = vadd.f32 %v14, %v15
  %v19 = vrot.slane %v18, 4
  %v20 = vadd.f32 %v18, %v19
  %v21 = vrot.slane %v20, 2
  %v22 = vadd.f32 %v20, %v21
  %v23 = vrot.slane %v22, 1
  %v24 = vadd.f32 %v22, %v23
  %v25 = vadd.f32 %v16, %v17
  %v26 = vrot.slane %v25, 4
  %v27 = vadd.f32 %v25, %v26
  %v28 = vrot.slane %v27, 2
  %v29 = vadd.f32 %v27, %v28
  %v30 = vrot.slane %v29, 1
  %v31 = vadd.f32 %v29, %v30
  %vm34 = vcmask 1041409
  %v35 = vsel %vm34, %v31, %v24
  %v37 = vadd.f32 %v13, %v35
  %38 = vst [vmem:[#allocation2] sm:$0x3] %v37
  // Predicated region
  $region10: #{multimodal_llm_forward.4} parent=0 // pred_check
    %p39 = pneg %p8
  $region11: #{multimodal_llm_forward.4} parent=0 // pred_check_branch
    %41 = sbr.rel (%p39) target = $region13
  $region12: #{multimodal_llm_forward.4} parent=0 // pred_region
    %v42 = vld [vmem:[#allocation2] sm:$0x3]
    %v43 = vmul.f32 %v42, 0.0625
    %44 = vst [vmem:[%s1] sm:$0x3] %v43
  $region13: #{multimodal_llm_forward.4} parent=0 // pred_fallthru
    _
  // Predicated region
  $region14: #{multimodal_llm_forward.4} parent=0 // pred_check
    _
  $region15: #{multimodal_llm_forward.4} parent=0 // pred_check_branch
    %46 = sbr.rel (0) target = $region17
  $region16: #{multimodal_llm_forward.4} parent=0 // pred_region
    _
  $region17: #{multimodal_llm_forward.4} parent=0 // pred_fallthru
    _
  // Predicated region
  $region18: #{multimodal_llm_forward.4} parent=0 // pred_check
    _
  $region19: #{multimodal_llm_forward.4} parent=0 // pred_check_branch
    %48 = sbr.rel (0) target = $region21
  $region20: #{multimodal_llm_forward.4} parent=0 // pred_region
    _
  $region21: #{multimodal_llm_forward.4} parent=0 // pred_fallthru
    _

// kernel: multimodal_llm_forward.7
$region0: #{multimodal_llm_forward.7}
  #allocation0 [shape = 'u32[]', space=smem, size = 0x4, offset = 0x4, fixed_abs, tag = 'smem constant byte address 0x4 - core index']
  #allocation1 [shape = 'u32[144,128]{1,0:T(1,128)}', space=vmem, size = 0x12000, scoped, tag = 'internal scratch']
  %s0 = inlined_call_operand.vmem [shape: bf16[24,128], index: 0, kind: input, shape index: {}]
  %s1 = inlined_call_operand.vmem [shape: bf16[128,256], index: 1, kind: input, shape index: {}]
  %s2 = inlined_call_operand.vmem [shape: f32[24,256], index: 2, kind: output, shape index: {}]
  %s3 = sld [smem:[#allocation0]]
  $region18: #{multimodal_llm_forward.7} parent=0
    _
  %s5 = ssub.s32 1, %s3
  %s6 = scalar_select 0, %s5, %s3
  // Predicated region
  $region2: #{multimodal_llm_forward.7} parent=0 // pred_check
    _
  $region3: #{multimodal_llm_forward.7} parent=0 // pred_check_branch
    %8 = sbr.rel (0) target = $region5
  $region4: #{multimodal_llm_forward.7} parent=0 // pred_region
    _
  $region5: #{multimodal_llm_forward.7} parent=0 // pred_fallthru
    _
  // Predicated region
  $region6: #{multimodal_llm_forward.7} parent=0 // pred_check
    _
  $region7: #{multimodal_llm_forward.7} parent=0 // pred_check_branch
    %10 = sbr.rel (0) target = $region9
  $region8: #{multimodal_llm_forward.7} parent=0 // pred_region
    _
  $region9: #{multimodal_llm_forward.7} parent=0 // pred_fallthru
    _
  %v12 = vld [vmem:[%s0] sm:$0xf]
  %v13 = vld [vmem:[%s0 + $0x4] sm:$0xf]
  %v14 = vld [vmem:[%s0 + $0x8] sm:$0xf]
  %v15 = vld [vmem:[%s1] sm:$0xff]
  %v16 = vld [vmem:[%s1 + $0x8] sm:$0xff]
  %v17 = vld [vmem:[%s1 + $0x10] sm:$0xff]
  %v18 = vld [vmem:[%s1 + $0x18] sm:$0xff]
  %v19 = vld [vmem:[%s1 + $0x20] sm:$0xff]
  %v20 = vld [vmem:[%s1 + $0x28] sm:$0xff]
  %v21 = vld [vmem:[%s1 + $0x30] sm:$0xff]
  %v22 = vld [vmem:[%s1 + $0x38] sm:$0xff]
  %v23 = vld [vmem:[%s1 + $0x40] sm:$0xff]
  %v24 = vld [vmem:[%s1 + $0x48] sm:$0xff]
  %v25 = vld [vmem:[%s1 + $0x50] sm:$0xff]
  %v26 = vld [vmem:[%s1 + $0x58] sm:$0xff]
  %v27 = vld [vmem:[%s1 + $0x60] sm:$0xff]
  %v28 = vld [vmem:[%s1 + $0x68] sm:$0xff]
  %v29 = vld [vmem:[%s1 + $0x70] sm:$0xff]
  %v30 = vld [vmem:[%s1 + $0x78] sm:$0xff]
  %v34 = vunpack.c.l.b16 %v12
  %v35 = vunpack.c.l.b16 %v13
  %v36 = vunpack.c.l.b16 %v14
  %v37 = vpack.c.b16 %v35, %v34
  %v38 = vpack.c.b16 %v36, %v36
  %v57 = vunpack.c.l.b16 %v15
  %v58 = vunpack.c.h.b16 %v15
  %v59 = vunpack.c.l.b16 %v16
  %v60 = vunpack.c.h.b16 %v16
  %v61 = vunpack.c.l.b16 %v17
  %v62 = vunpack.c.h.b16 %v17
  %v63 = vunpack.c.l.b16 %v18
  %v64 = vunpack.c.h.b16 %v18
  %v65 = vunpack.c.l.b16 %v19
  %v66 = vunpack.c.h.b16 %v19
  %v67 = vunpack.c.l.b16 %v20
  %v68 = vunpack.c.h.b16 %v20
  %v69 = vunpack.c.l.b16 %v21
  %v70 = vunpack.c.h.b16 %v21
  %v71 = vunpack.c.l.b16 %v22
  %v72 = vunpack.c.h.b16 %v22
  %v73 = vunpack.c.l.b16 %v23
  %v74 = vunpack.c.h.b16 %v23
  %v75 = vunpack.c.l.b16 %v24
  %v76 = vunpack.c.h.b16 %v24
  %v77 = vunpack.c.l.b16 %v25
  %v78 = vunpack.c.h.b16 %v25
  %v79 = vunpack.c.l.b16 %v26
  %v80 = vunpack.c.h.b16 %v26
  %v81 = vunpack.c.l.b16 %v27
  %v82 = vunpack.c.h.b16 %v27
  %v83 = vunpack.c.l.b16 %v28
  %v84 = vunpack.c.h.b16 %v28
  %v85 = vunpack.c.l.b16 %v29
  %v86 = vunpack.c.h.b16 %v29
  %v87 = vunpack.c.l.b16 %v30
  %v88 = vunpack.c.h.b16 %v30
  %v89 = vpack.c.b16 %v59, %v57
  %v90 = vpack.c.b16 %v60, %v58
  %v91 = vpack.c.b16 %v63, %v61
  %v92 = vpack.c.b16 %v64, %v62
  %v93 = vpack.c.b16 %v67, %v65
  %v94 = vpack.c.b16 %v68, %v66
  %v95 = vpack.c.b16 %v71, %v69
  %v96 = vpack.c.b16 %v72, %v70
  %v97 = vpack.c.b16 %v75, %v73
  %v98 = vpack.c.b16 %v76, %v74
  %v99 = vpack.c.b16 %v79, %v77
  %v100 = vpack.c.b16 %v80, %v78
  %v101 = vpack.c.b16 %v83, %v81
  %v102 = vpack.c.b16 %v84, %v82
  %v103 = vpack.c.b16 %v87, %v85
  %v104 = vpack.c.b16 %v88, %v86
  %121 = vmatprep.subr.bf16.mxu0 %v90
  %122 = vmatpush1.bf16.msra.mxu0 %v89
  %123 = vmatprep.subr.bf16.mxu0 %v92
  %124 = vmatpush1.bf16.msra.mxu0 %v91
  %125 = vmatprep.subr.bf16.mxu0 %v94
  %126 = vmatpush1.bf16.msra.mxu0 %v93
  %127 = vmatprep.subr.bf16.mxu0 %v96
  %128 = vmatpush1.bf16.msra.mxu0 %v95
  %129 = vmatprep.subr.bf16.mxu0 %v98
  %130 = vmatpush1.bf16.msra.mxu0 %v97
  %131 = vmatprep.subr.bf16.mxu0 %v100
  %132 = vmatpush1.bf16.msra.mxu0 %v99
  %133 = vmatprep.subr.bf16.mxu0 %v102
  %134 = vmatpush1.bf16.msra.mxu0 %v101
  %135 = vmatprep.subr.bf16.mxu0 %v104
  %136 = vmatpush1.bf16.msra.mxu0 %v103
  %137 = vmatprep.subr.bf16.mxu0 0
  %138 = vmatpush1.bf16.msra.mxu0 0
  %139 = vmatprep.subr.bf16.mxu0 0
  %140 = vmatpush1.bf16.msra.mxu0 0
  %141 = vmatprep.subr.bf16.mxu0 0
  %142 = vmatpush1.bf16.msra.mxu0 0
  %143 = vmatprep.subr.bf16.mxu0 0
  %144 = vmatpush1.bf16.msra.mxu0 0
  %145 = vmatprep.subr.bf16.mxu0 0
  %146 = vmatpush1.bf16.msra.mxu0 0
  %147 = vmatprep.subr.bf16.mxu0 0
  %148 = vmatpush1.bf16.msra.mxu0 0
  %149 = vmatprep.subr.bf16.mxu0 0
  %150 = vmatpush1.bf16.msra.mxu0 0
  %151 = vmatprep.subr.bf16.mxu0 0
  %152 = vmatpush1.bf16.msra.mxu0 0
  %153 = vmatprep.mubr.bf16.mxu0 0
  %154 = vmatmul.mubr.bf16.gmra.mrb[0].mxu0 %v37
  %v155 = vpop.f32.mrb[0].mxu0
  %v156 = vadd.f32 0.0, %v155
  %v157 = vpop.f32.mrb[0].mxu0
  %v158 = vadd.f32 0.0, %v157
  %v159 = vpop.f32.mrb[0].mxu0
  %v160 = vadd.f32 0.0, %v159
  %v161 = vpop.f32.mrb[0].mxu0
  %v162 = vadd.f32 0.0, %v161
  %163 = vmatprep.mubr.bf16.mxu0 0
  %164 = vmatmul.mubr.bf16.gmra.mrb[0].mxu0 %v38
  %v165 = vpop.f32.mrb[0].mxu0
  %v166 = vadd.f32 0.0, %v165
  %v167 = vpop.f32.mrb[0].mxu0
  %v168 = vadd.f32 0.0, %v167
  %v169 = vpop.f32.mrb[0].mxu0
  %v170 = vpop.f32.mrb[0].mxu0
  %171 = vdwg.mxu0
  %172 = vst [vmem:[%s2] sm:$0xff] %v156
  %173 = vst [vmem:[%s2 + $0x8] sm:$0xff] %v158
  %174 = vst [vmem:[%s2 + $0x10] sm:$0xff] %v160
  %175 = vst [vmem:[%s2 + $0x18] sm:$0xff] %v162
  %176 = vst [vmem:[%s2 + $0x20] sm:$0xff] %v166
  %177 = vst [vmem:[%s2 + $0x28] sm:$0xff] %v168
  // Predicated region
  $region10: #{multimodal_llm_forward.7} parent=0 // pred_check
    _
  $region11: #{multimodal_llm_forward.7} parent=0 // pred_check_branch
    %179 = sbr.rel (0) target = $region13
  $region12: #{multimodal_llm_forward.7} parent=0 // pred_region
    _
  $region13: #{multimodal_llm_forward.7} parent=0 // pred_fallthru
    _
  // Predicated region
  $region14: #{multimodal_llm_forward.7} parent=0 // pred_check
    _
  $region15: #{multimodal_llm_forward.7} parent=0 // pred_check_branch
    %181 = sbr.rel (0) target = $region17
  $region16: #{multimodal_llm_forward.7} parent=0 // pred_region
    _
  $region17: #{multimodal_llm_forward.7} parent=0 // pred_fallthru
    _

// kernel: multimodal_llm_forward.6
$region0: #{multimodal_llm_forward.6}
  #allocation0 [shape = 'u32[]', space=smem, size = 0x4, offset = 0x4, fixed_abs, tag = 'smem constant byte address 0x4 - core index']
  #allocation1 [shape = 'u32[144,128]{1,0:T(1,128)}', space=vmem, size = 0x12000, scoped, tag = 'internal scratch']
  %s0 = inlined_call_operand.vmem [shape: f32[2,256], index: 0, kind: input, shape index: {}]
  %s1 = inlined_call_operand.vmem [shape: f32[2,128], index: 1, kind: input, shape index: {}]
  %s2 = inlined_call_operand.vmem [shape: f32[2,128], index: 2, kind: input, shape index: {}]
  %s3 = inlined_call_operand.vmem [shape: bf16[256,128], index: 3, kind: input, shape index: {}]
  %s4 = inlined_call_operand.hbm [shape: f32[1,128], index: 4, kind: input, shape index: {}]
  %s5 = inlined_call_operand.hbm [shape: f32[1,128], index: 5, kind: input, shape index: {}]
  %s6 = inlined_call_operand.hbm [shape: f32[1,128], index: 6, kind: input, shape index: {}]
  %s7 = inlined_call_operand.vmem [shape: bf16[128,128], index: 7, kind: input, shape index: {}]
  %s8 = inlined_call_operand.hbm [shape: f32[1,128], index: 8, kind: input, shape index: {}]
  %s9 = inlined_call_operand.hbm [shape: f32[1,128], index: 9, kind: input, shape index: {}]
  %s10 = inlined_call_operand.hbm [shape: f32[1,128], index: 10, kind: input, shape index: {}]
  %s11 = inlined_call_operand.hbm [shape: bf16[128,128], index: 11, kind: input, shape index: {}]
  %s12 = inlined_call_operand.hbm [shape: f32[1,128], index: 12, kind: input, shape index: {}]
  %s13 = inlined_call_operand.hbm [shape: f32[1,128], index: 13, kind: input, shape index: {}]
  %s14 = inlined_call_operand.hbm [shape: f32[1,128], index: 14, kind: input, shape index: {}]
  %s15 = inlined_call_operand.vmem [shape: bf16[2,3,128], index: 15, kind: output, shape index: {}]
  %s16 = sld [smem:[#allocation0]]
  $region110: #{multimodal_llm_forward.6} parent=0
    _
  %s18 = ssub.s32 1, %s16
  %s19 = scalar_select 0, %s18, %s16
  $region1: #{multimodal_llm_forward.6} parent=0
    #allocation2 [shape = 'u8[512]{0}', space=vmem, size = 0x400, scoped, tag = 'input window, operand 4, single buffered']
    #allocation3 [shape = 's32[1]{0}', space=sflag, size = 0x4, scoped, tag = 'scoped memory for multimodal_llm_forward.6']
    #allocation4 [shape = 'u8[512]{0}', space=vmem, size = 0x400, scoped, tag = 'input window, operand 5, single buffered']
    #allocation5 [shape = 's32[1]{0}', space=sflag, size = 0x4, scoped, tag = 'scoped memory for multimodal_llm_forward.6']
    #allocation6 [shape = 'u8[512]{0}', space=vmem, size = 0x400, scoped, tag = 'input window, operand 6, single buffered']
    #allocation7 [shape = 'u8[512]{0}', space=vmem, size = 0x400, scoped, tag = 'input window, operand 8, single buffered']
    #allocation8 [shape = 's32[1]{0}', space=sflag, size = 0x4, scoped, tag = 'scoped memory for multimodal_llm_forward.6']
    #allocation9 [shape = 'u8[512]{0}', space=vmem, size = 0x400, scoped, tag = 'input window, operand 9, single buffered']
    #allocation10 [shape = 'u8[512]{0}', space=vmem, size = 0x400, scoped, tag = 'input window, operand 10, single buffered']
    #allocation11 [shape = 's32[1]{0}', space=sflag, size = 0x4, scoped, tag = 'scoped memory for multimodal_llm_forward.6']
    #allocation12 [shape = 'u8[32768]{0}', space=vmem, size = 0x8000, scoped, tag = 'input window, operand 11, single buffered']
    #allocation13 [shape = 'u8[512]{0}', space=vmem, size = 0x400, scoped, tag = 'input window, operand 12, single buffered']
    #allocation14 [shape = 's32[1]{0}', space=sflag, size = 0x4, scoped, tag = 'scoped memory for multimodal_llm_forward.6']
    #allocation15 [shape = 'u8[512]{0}', space=vmem, size = 0x400, scoped, tag = 'input window, operand 13, single buffered']
    #allocation16 [shape = 'u8[512]{0}', space=vmem, size = 0x400, scoped, tag = 'input window, operand 14, single buffered']
    #allocation17 [shape = 's32[1]{0}', space=sflag, size = 0x4, scoped, tag = 'scoped memory for multimodal_llm_forward.6']
    %20 = vsyncpa [#allocation3], 0
    %21 = vsyncpa [#allocation5], 0
    %22 = vsyncpa [#allocation8], 0
    %23 = vsyncpa [#allocation11], 0
    %24 = vsyncpa [#allocation14], 0
    %25 = vsyncpa [#allocation17], 0
    // Predicated region
    $region2: #{multimodal_llm_forward.6} parent=1 // pred_check
      _
    $region3: #{multimodal_llm_forward.6} parent=1 // pred_check_branch
      %27 = sbr.rel (0) target = $region5
    $region4: #{multimodal_llm_forward.6} parent=1 // pred_region
      _
    $region5: #{multimodal_llm_forward.6} parent=1 // pred_fallthru
      _
    // Predicated region
    $region6: #{multimodal_llm_forward.6} parent=1 // pred_check
      _
    $region7: #{multimodal_llm_forward.6} parent=1 // pred_check_branch
      %29 = sbr.rel (0) target = $region9
    $region8: #{multimodal_llm_forward.6} parent=1 // pred_region
      _
    $region9: #{multimodal_llm_forward.6} parent=1 // pred_fallthru
      _
    // Predicated region
    $region10: #{multimodal_llm_forward.6} parent=1 // pred_check
      _
    $region11: #{multimodal_llm_forward.6} parent=1 // pred_check_branch
      %31 = sbr.rel (0) target = $region13
    $region12: #{multimodal_llm_forward.6} parent=1 // pred_region
      _
    $region13: #{multimodal_llm_forward.6} parent=1 // pred_fallthru
      _
    // Predicated region
    $region14: #{multimodal_llm_forward.6} parent=1 // pred_check
      _
    $region15: #{multimodal_llm_forward.6} parent=1 // pred_check_branch
      %33 = sbr.rel (0) target = $region17
    $region16: #{multimodal_llm_forward.6} parent=1 // pred_region
      _
    $region17: #{multimodal_llm_forward.6} parent=1 // pred_fallthru
      _
    // Predicated region
    $region18: #{multimodal_llm_forward.6} parent=1 // pred_check
      _
    $region19: #{multimodal_llm_forward.6} parent=1 // pred_check_branch
      %35 = sbr.rel (0) target = $region21
    $region20: #{multimodal_llm_forward.6} parent=1 // pred_region
      %s37 = ssub.s32 16, 16
      %38 = vsyncadd [#allocation3], %s37
      %s40 = sshll.u32 [#allocation2], 4
      %s41 = int_to_ptr.vmem [resolvable:$true] %s40
      %43 = dma.hbm_to_vmem [thread:$0]  %s4, 16, %s41, [#allocation3]
    $region21: #{multimodal_llm_forward.6} parent=1 // pred_fallthru
      _
    // Predicated region
    $region22: #{multimodal_llm_forward.6} parent=1 // pred_check
      _
    $region23: #{multimodal_llm_forward.6} parent=1 // pred_check_branch
      %45 = sbr.rel (0) target = $region25
    $region24: #{multimodal_llm_forward.6} parent=1 // pred_region
      %s47 = ssub.s32 16, 16
      %48 = vsyncadd [#allocation5], %s47
      %s50 = sshll.u32 [#allocation4], 4
      %s51 = int_to_ptr.vmem [resolvable:$true] %s50
      %53 = dma.hbm_to_vmem [thread:$0]  %s5, 16, %s51, [#allocation5]
    $region25: #{multimodal_llm_forward.6} parent=1 // pred_fallthru
      _
    // Predicated region
    $region26: #{multimodal_llm_forward.6} parent=1 // pred_check
      _
    $region27: #{multimodal_llm_forward.6} parent=1 // pred_check_branch
      %55 = sbr.rel (0) target = $region29
    $region28: #{multimodal_llm_forward.6} parent=1 // pred_region
      %s57 = ssub.s32 16, 16
      %58 = vsyncadd [#allocation5], %s57
      %s60 = sshll.u32 [#allocation6], 4
      %s61 = int_to_ptr.vmem [resolvable:$true] %s60
      %63 = dma.hbm_to_vmem [thread:$0]  %s6, 16, %s61, [#allocation5]
    $region29: #{multimodal_llm_forward.6} parent=1 // pred_fallthru
      _
    // Predicated region
    $region30: #{multimodal_llm_forward.6} parent=1 // pred_check
      _
    $region31: #{multimodal_llm_forward.6} parent=1 // pred_check_branch
      %65 = sbr.rel (0) target = $region33
    $region32: #{multimodal_llm_forward.6} parent=1 // pred_region
      _
    $region33: #{multimodal_llm_forward.6} parent=1 // pred_fallthru
      _
    // Predicated region
    $region34: #{multimodal_llm_forward.6} parent=1 // pred_check
      _
    $region35: #{multimodal_llm_forward.6} parent=1 // pred_check_branch
      %67 = sbr.rel (0) target = $region37
    $region36: #{multimodal_llm_forward.6} parent=1 // pred_region
      %s69 = ssub.s32 16, 16
      %70 = vsyncadd [#allocation8], %s69
      %s72 = sshll.u32 [#allocation7], 4
      %s73 = int_to_ptr.vmem [resolvable:$true] %s72
      %75 = dma.hbm_to_vmem [thread:$0]  %s8, 16, %s73, [#allocation8]
    $region37: #{multimodal_llm_forward.6} parent=1 // pred_fallthru
      _
    // Predicated region
    $region38: #{multimodal_llm_forward.6} parent=1 // pred_check
      _
    $region39: #{multimodal_llm_forward.6} parent=1 // pred_check_branch
      %77 = sbr.rel (0) target = $region41
    $region40: #{multimodal_llm_forward.6} parent=1 // pred_region
      %s79 = ssub.s32 16, 16
      %80 = vsyncadd [#allocation8], %s79
      %s82 = sshll.u32 [#allocation9], 4
      %s83 = int_to_ptr.vmem [resolvable:$true] %s82
      %85 = dma.hbm_to_vmem [thread:$0]  %s9, 16, %s83, [#allocation8]
    $region41: #{multimodal_llm_forward.6} parent=1 // pred_fallthru
      _
    // Predicated region
    $region42: #{multimodal_llm_forward.6} parent=1 // pred_check
      _
    $region43: #{multimodal_llm_forward.6} parent=1 // pred_check_branch
      %87 = sbr.rel (0) target = $region45
    $region44: #{multimodal_llm_forward.6} parent=1 // pred_region
      %s89 = ssub.s32 16, 16
      %90 = vsyncadd [#allocation11], %s89
      %s92 = sshll.u32 [#allocation10], 4
      %s93 = int_to_ptr.vmem [resolvable:$true] %s92
      %95 = dma.hbm_to_vmem [thread:$0]  %s10, 16, %s93, [#allocation11]
    $region45: #{multimodal_llm_forward.6} parent=1 // pred_fallthru
      _
    // Predicated region
    $region46: #{multimodal_llm_forward.6} parent=1 // pred_check
      _
    $region47: #{multimodal_llm_forward.6} parent=1 // pred_check_branch
      %97 = sbr.rel (0) target = $region49
    $region48: #{multimodal_llm_forward.6} parent=1 // pred_region
      %s99 = ssub.s32 1024, 1024
      %100 = vsyncadd [#allocation11], %s99
      %s101 = sshll.u32 [#allocation12], 4
      %s102 = int_to_ptr.vmem [resolvable:$true] %s101
      %107 = dma.hbm_to_vmem [thread:$0]  %s11, 1024, %s102, [#allocation11], 64, 64, 4
    $region49: #{multimodal_llm_forward.6} parent=1 // pred_fallthru
      _
    // Predicated region
    $region50: #{multimodal_llm_forward.6} parent=1 // pred_check
      _
    $region51: #{multimodal_llm_forward.6} parent=1 // pred_check_branch
      %109 = sbr.rel (0) target = $region53
    $region52: #{multimodal_llm_forward.6} parent=1 // pred_region
      %s111 = ssub.s32 16, 16
      %112 = vsyncadd [#allocation14], %s111
      %s114 = sshll.u32 [#allocation13], 4
      %s115 = int_to_ptr.vmem [resolvable:$true] %s114
      %117 = dma.hbm_to_vmem [thread:$0]  %s12, 16, %s115, [#allocation14]
    $region53: #{multimodal_llm_forward.6} parent=1 // pred_fallthru
      _
    // Predicated region
    $region54: #{multimodal_llm_forward.6} parent=1 // pred_check
      _
    $region55: #{multimodal_llm_forward.6} parent=1 // pred_check_branch
      %119 = sbr.rel (0) target = $region57
    $region56: #{multimodal_llm_forward.6} parent=1 // pred_region
      %s121 = ssub.s32 16, 16
      %122 = vsyncadd [#allocation14], %s121
      %s124 = sshll.u32 [#allocation15], 4
      %s125 = int_to_ptr.vmem [resolvable:$true] %s124
      %127 = dma.hbm_to_vmem [thread:$0]  %s13, 16, %s125, [#allocation14]
    $region57: #{multimodal_llm_forward.6} parent=1 // pred_fallthru
      _
    // Predicated region
    $region58: #{multimodal_llm_forward.6} parent=1 // pred_check
      _
    $region59: #{multimodal_llm_forward.6} parent=1 // pred_check_branch
      %129 = sbr.rel (0) target = $region61
    $region60: #{multimodal_llm_forward.6} parent=1 // pred_region
      %s131 = ssub.s32 16, 16
      %132 = vsyncadd [#allocation17], %s131
      %s134 = sshll.u32 [#allocation16], 4
      %s135 = int_to_ptr.vmem [resolvable:$true] %s134
      %137 = dma.hbm_to_vmem [thread:$0]  %s14, 16, %s135, [#allocation17]
    $region61: #{multimodal_llm_forward.6} parent=1 // pred_fallthru
      _
    // Predicated region
    $region62: #{multimodal_llm_forward.6} parent=1 // pred_check
      _
    $region63: #{multimodal_llm_forward.6} parent=1 // pred_check_branch
      %139 = sbr.rel (0) target = $region65
    $region64: #{multimodal_llm_forward.6} parent=1 // pred_region
      %140 = dma.done [#allocation3], 16
    $region65: #{multimodal_llm_forward.6} parent=1 // pred_fallthru
      _
    // Predicated region
    $region66: #{multimodal_llm_forward.6} parent=1 // pred_check
      _
    $region67: #{multimodal_llm_forward.6} parent=1 // pred_check_branch
      %142 = sbr.rel (0) target = $region69
    $region68: #{multimodal_llm_forward.6} parent=1 // pred_region
      %143 = dma.done [#allocation5], 16
    $region69: #{multimodal_llm_forward.6} parent=1 // pred_fallthru
      _
    // Predicated region
    $region70: #{multimodal_llm_forward.6} parent=1 // pred_check
      _
    $region71: #{multimodal_llm_forward.6} parent=1 // pred_check_branch
      %145 = sbr.rel (0) target = $region73
    $region72: #{multimodal_llm_forward.6} parent=1 // pred_region
      %146 = dma.done [#allocation5], 16
    $region73: #{multimodal_llm_forward.6} parent=1 // pred_fallthru
      _
    // Predicated region
    $region74: #{multimodal_llm_forward.6} parent=1 // pred_check
      _
    $region75: #{multimodal_llm_forward.6} parent=1 // pred_check_branch
      %148 = sbr.rel (0) target = $region77
    $region76: #{multimodal_llm_forward.6} parent=1 // pred_region
      %149 = dma.done [#allocation8], 16
    $region77: #{multimodal_llm_forward.6} parent=1 // pred_fallthru
      _
    // Predicated region
    $region78: #{multimodal_llm_forward.6} parent=1 // pred_check
      _
    $region79: #{multimodal_llm_forward.6} parent=1 // pred_check_branch
      %151 = sbr.rel (0) target = $region81
    $region80: #{multimodal_llm_forward.6} parent=1 // pred_region
      %152 = dma.done [#allocation8], 16
    $region81: #{multimodal_llm_forward.6} parent=1 // pred_fallthru
      _
    // Predicated region
    $region82: #{multimodal_llm_forward.6} parent=1 // pred_check
      _
    $region83: #{multimodal_llm_forward.6} parent=1 // pred_check_branch
      %154 = sbr.rel (0) target = $region85
    $region84: #{multimodal_llm_forward.6} parent=1 // pred_region
      %155 = dma.done [#allocation11], 16
    $region85: #{multimodal_llm_forward.6} parent=1 // pred_fallthru
      _
    // Predicated region
    $region86: #{multimodal_llm_forward.6} parent=1 // pred_check
      _
    $region87: #{multimodal_llm_forward.6} parent=1 // pred_check_branch
      %157 = sbr.rel (0) target = $region89
    $region88: #{multimodal_llm_forward.6} parent=1 // pred_region
      %158 = dma.done [#allocation11], 1024
    $region89: #{multimodal_llm_forward.6} parent=1 // pred_fallthru
      _
    // Predicated region
    $region90: #{multimodal_llm_forward.6} parent=1 // pred_check
      _
    $region91: #{multimodal_llm_forward.6} parent=1 // pred_check_branch
      %160 = sbr.rel (0) target = $region93
    $region92: #{multimodal_llm_forward.6} parent=1 // pred_region
      %161 = dma.done [#allocation14], 16
    $region93: #{multimodal_llm_forward.6} parent=1 // pred_fallthru
      _
    // Predicated region
    $region94: #{multimodal_llm_forward.6} parent=1 // pred_check
      _
    $region95: #{multimodal_llm_forward.6} parent=1 // pred_check_branch
      %163 = sbr.rel (0) target = $region97
    $region96: #{multimodal_llm_forward.6} parent=1 // pred_region
      %164 = dma.done [#allocation14], 16
    $region97: #{multimodal_llm_forward.6} parent=1 // pred_fallthru
      _
    // Predicated region
    $region98: #{multimodal_llm_forward.6} parent=1 // pred_check
      _
    $region99: #{multimodal_llm_forward.6} parent=1 // pred_check_branch
      %166 = sbr.rel (0) target = $region101
    $region100: #{multimodal_llm_forward.6} parent=1 // pred_region
      %167 = dma.done [#allocation17], 16
    $region101: #{multimodal_llm_forward.6} parent=1 // pred_fallthru
      _
    %v169 = vld [vmem:[%s2] sm:$0x3]
    %v170 = vpack.c.bf16 %v169, %v169
    %v171 = vld [vmem:[#allocation12] sm:$0xf]
    %v172 = vld [vmem:[#allocation12 + $0x4] sm:$0xf]
    %v173 = vld [vmem:[#allocation12 + $0x8] sm:$0xf]
    %v174 = vld [vmem:[#allocation12 + $0xc] sm:$0xf]
    %v175 = vld [vmem:[#allocation12 + $0x10] sm:$0xf]
    %v176 = vld [vmem:[#allocation12 + $0x14] sm:$0xf]
    %v177 = vld [vmem:[#allocation12 + $0x18] sm:$0xf]
    %v178 = vld [vmem:[#allocation12 + $0x1c] sm:$0xf]
    %v179 = vld [vmem:[#allocation12 + $0x20] sm:$0xf]
    %v180 = vld [vmem:[#allocation12 + $0x24] sm:$0xf]
    %v181 = vld [vmem:[#allocation12 + $0x28] sm:$0xf]
    %v182 = vld [vmem:[#allocation12 + $0x2c] sm:$0xf]
    %v183 = vld [vmem:[#allocation12 + $0x30] sm:$0xf]
    %v184 = vld [vmem:[#allocation12 + $0x34] sm:$0xf]
    %v185 = vld [vmem:[#allocation12 + $0x38] sm:$0xf]
    %v186 = vld [vmem:[#allocation12 + $0x3c] sm:$0xf]
    %v187 = vld [vmem:[#allocation13] sm:$0x1]
    %v189 = vlaneseq
    %v190 = vshrl.u32 %v189, 7
    %v191 = vsub.s32 0, %v190
    %v192 = vrot.slane %v187, %v191
    %v210 = vunpack.c.l.b16 %v171
    %v211 = vunpack.c.l.b16 %v172
    %v212 = vunpack.c.l.b16 %v173
    %v213 = vunpack.c.l.b16 %v174
    %v214 = vunpack.c.l.b16 %v175
    %v215 = vunpack.c.l.b16 %v176
    %v216 = vunpack.c.l.b16 %v177
    %v217 = vunpack.c.l.b16 %v178
    %v218 = vunpack.c.l.b16 %v179
    %v219 = vunpack.c.l.b16 %v180
    %v220 = vunpack.c.l.b16 %v181
    %v221 = vunpack.c.l.b16 %v182
    %v222 = vunpack.c.l.b16 %v183
    %v223 = vunpack.c.l.b16 %v184
    %v224 = vunpack.c.l.b16 %v185
    %v225 = vunpack.c.l.b16 %v186
    %v226 = vpack.c.b16 %v211, %v210
    %v227 = vpack.c.b16 %v213, %v212
    %v228 = vpack.c.b16 %v215, %v214
    %v229 = vpack.c.b16 %v217, %v216
    %v230 = vpack.c.b16 %v219, %v218
    %v231 = vpack.c.b16 %v221, %v220
    %v232 = vpack.c.b16 %v223, %v222
    %v233 = vpack.c.b16 %v225, %v224
    %242 = vmatprep.subr.bf16.mxu0 0
    %243 = vmatpush1.bf16.msra.mxu0 %v226
    %244 = vmatprep.subr.bf16.mxu0 0
    %245 = vmatpush1.bf16.msra.mxu0 %v227
    %246 = vmatprep.subr.bf16.mxu0 0
    %247 = vmatpush1.bf16.msra.mxu0 %v228
    %248 = vmatprep.subr.bf16.mxu0 0
    %249 = vmatpush1.bf16.msra.mxu0 %v229
    %250 = vmatprep.subr.bf16.mxu0 0
    %251 = vmatpush1.bf16.msra.mxu0 %v230
    %252 = vmatprep.subr.bf16.mxu0 0
    %253 = vmatpush1.bf16.msra.mxu0 %v231
    %254 = vmatprep.subr.bf16.mxu0 0
    %255 = vmatpush1.bf16.msra.mxu0 %v232
    %256 = vmatprep.subr.bf16.mxu0 0
    %257 = vmatpush1.bf16.msra.mxu0 %v233
    %258 = vmatprep.subr.bf16.mxu0 0
    %259 = vmatpush1.bf16.msra.mxu0 0
    %260 = vmatprep.subr.bf16.mxu0 0
    %261 = vmatpush1.bf16.msra.mxu0 0
    %262 = vmatprep.subr.bf16.mxu0 0
    %263 = vmatpush1.bf16.msra.mxu0 0
    %264 = vmatprep.subr.bf16.mxu0 0
    %265 = vmatpush1.bf16.msra.mxu0 0
    %266 = vmatprep.subr.bf16.mxu0 0
    %267 = vmatpush1.bf16.msra.mxu0 0
    %268 = vmatprep.subr.bf16.mxu0 0
    %269 = vmatpush1.bf16.msra.mxu0 0
    %270 = vmatprep.subr.bf16.mxu0 0
    %271 = vmatpush1.bf16.msra.mxu0 0
    %272 = vmatprep.subr.bf16.mxu0 0
    %273 = vmatpush1.bf16.msra.mxu0 0
    %274 = vmatprep.mubr.bf16.mxu0 0
    %275 = vmatmul.mubr.bf16.gmra.mrb[0].mxu0 %v170
    %v276 = vpop.f32.mrb[0].mxu0
    %v277 = vadd.f32 %v192, %v276
    %v278 = vpop.f32.mrb[0].mxu0
    %v279 = vpop.f32.mrb[0].mxu0
    %v280 = vpop.f32.mrb[0].mxu0
    %281 = vdwg.mxu0
    %v282 = vmax.f32 %v277, 0.0
    %vm283 = vcmask 1041408
    %v284 = vsel %vm283, %v282, 0.0
    %285 = vadd.xlane.f32.xlu0 %v284
    %v286 = vpop.xlane.xlu0 %285
    %v287 = vrcp.pop 128.0
    %v288 = vmul.f32 %v286, %v287
    %v289 = vmul.f32 %v282, %v282
    %v290 = vsel %vm283, %v289, 0.0
    %291 = vadd.xlane.f32.xlu0 %v290
    %v292 = vpop.xlane.xlu0 %291
    %v293 = vmul.f32 %v292, %v287
    %v294 = vmul.f32 %v288, %v288
    %v295 = vsub.f32 %v293, %v294
    %v296 = vsub.f32 %v282, %v288
    %v297 = vadd.f32 %v295, 1e-05
    %v298 = vrsqrt.pop %v297
    %v299 = vmul.f32 %v296, %v298
    %v300 = vld [vmem:[#allocation15] sm:$0x1]
    %v302 = vlaneseq
    %v303 = vshrl.u32 %v302, 7
    %v304 = vsub.s32 0, %v303
    %v305 = vrot.slane %v300, %v304
    %v307 = vmul.f32 %v299, %v305
    %v308 = vld [vmem:[#allocation16] sm:$0x1]
    %v310 = vlaneseq
    %v311 = vshrl.u32 %v310, 7
    %v312 = vsub.s32 0, %v311
    %v313 = vrot.slane %v308, %v312
    %v315 = vadd.f32 %v307, %v313
    %v316 = vpack.c.bf16 %v315, %v315
    %v319 = vunpack.c.l.s4 1966171168
    %v320 = vunpack.c.0.s8 %v319
    %v321 = vlaneseq
    %v322 = vshrl.u32 %v321, 7
    %v323 = vsub.s32 %v320, %v322
    %v324 = vrot.slane %v316, %v323
    %v326 = vunpack.c.l.s4 1966171168
    %v327 = vunpack.c.0.s8 %v326
    %v328 = vlaneseq
    %v329 = vshrl.u32 %v328, 7
    %v330 = vsub.s32 %v327, %v329
    %v331 = vrot.slane %v324, %v330
    %v332 = vunpack.i.l.s16 %v331
    %v333 = vunpack.i.h.s16 %v331
    %v334 = vpack.i.b16 %v332, %v332
    %v335 = vpack.i.b16 %v333, %v333
    %v337 = vunpack.c.l.s4 857870592
    %v338 = vunpack.c.0.s8 %v337
    %v339 = vlaneseq
    %v340 = vshrl.u32 %v339, 7
    %v341 = vsub.s32 %v338, %v340
    %v342 = vrot.slane %v334, %v341
    %v344 = vunpack.c.l.s4 857870592
    %v345 = vunpack.c.0.s8 %v344
    %v346 = vlaneseq
    %v347 = vshrl.u32 %v346, 7
    %v348 = vsub.s32 %v345, %v347
    %v349 = vrot.slane %v335, %v348
    %vm352 = vcmask 1040384
    %vm353 = vsmask.f32 256
    %vm354 = vmand %vm352, %vm353
    %v355 = vld [vmem:[%s15] sm:$0x1]
    %v356 = vsel %vm354, %v342, %v355
    %357 = vst [vmem:[%s15] sm:$0x1] %v356
    %v358 = vld [vmem:[%s15 + $0x2] sm:$0x1]
    %v359 = vsel %vm354, %v349, %v358
    %360 = vst [vmem:[%s15 + $0x2] sm:$0x1] %v359
    %v361 = vld [vmem:[%s1] sm:$0x3]
    %v362 = vpack.c.bf16 %v361, %v361
    %v363 = vld [vmem:[%s7] sm:$0xf]
    %v364 = vld [vmem:[%s7 + $0x4] sm:$0xf]
    %v365 = vld [vmem:[%s7 + $0x8] sm:$0xf]
    %v366 = vld [vmem:[%s7 + $0xc] sm:$0xf]
    %v367 = vld [vmem:[%s7 + $0x10] sm:$0xf]
    %v368 = vld [vmem:[%s7 + $0x14] sm:$0xf]
    %v369 = vld [vmem:[%s7 + $0x18] sm:$0xf]
    %v370 = vld [vmem:[%s7 + $0x1c] sm:$0xf]
    %v371 = vld [vmem:[%s7 + $0x20] sm:$0xf]
    %v372 = vld [vmem:[%s7 + $0x24] sm:$0xf]
    %v373 = vld [vmem:[%s7 + $0x28] sm:$0xf]
    %v374 = vld [vmem:[%s7 + $0x2c] sm:$0xf]
    %v375 = vld [vmem:[%s7 + $0x30] sm:$0xf]
    %v376 = vld [vmem:[%s7 + $0x34] sm:$0xf]
    %v377 = vld [vmem:[%s7 + $0x38] sm:$0xf]
    %v378 = vld [vmem:[%s7 + $0x3c] sm:$0xf]
    %v379 = vld [vmem:[#allocation7] sm:$0x1]
    %v381 = vlaneseq
    %v382 = vshrl.u32 %v381, 7
    %v383 = vsub.s32 0, %v382
    %v384 = vrot.slane %v379, %v383
    %v402 = vunpack.c.l.b16 %v363
    %v403 = vunpack.c.l.b16 %v364
    %v404 = vunpack.c.l.b16 %v365
    %v405 = vunpack.c.l.b16 %v366
    %v406 = vunpack.c.l.b16 %v367
    %v407 = vunpack.c.l.b16 %v368
    %v408 = vunpack.c.l.b16 %v369
    %v409 = vunpack.c.l.b16 %v370
    %v410 = vunpack.c.l.b16 %v371
    %v411 = vunpack.c.l.b16 %v372
    %v412 = vunpack.c.l.b16 %v373
    %v413 = vunpack.c.l.b16 %v374
    %v414 = vunpack.c.l.b16 %v375
    %v415 = vunpack.c.l.b16 %v376
    %v416 = vunpack.c.l.b16 %v377
    %v417 = vunpack.c.l.b16 %v378
    %v418 = vpack.c.b16 %v403, %v402
    %v419 = vpack.c.b16 %v405, %v404
    %v420 = vpack.c.b16 %v407, %v406
    %v421 = vpack.c.b16 %v409, %v408
    %v422 = vpack.c.b16 %v411, %v410
    %v423 = vpack.c.b16 %v413, %v412
    %v424 = vpack.c.b16 %v415, %v414
    %v425 = vpack.c.b16 %v417, %v416
    %434 = vmatprep.subr.bf16.mxu0 0
    %435 = vmatpush1.bf16.msra.mxu0 %v418
    %436 = vmatprep.subr.bf16.mxu0 0
    %437 = vmatpush1.bf16.msra.mxu0 %v419
    %438 = vmatprep.subr.bf16.mxu0 0
    %439 = vmatpush1.bf16.msra.mxu0 %v420
    %440 = vmatprep.subr.bf16.mxu0 0
    %441 = vmatpush1.bf16.msra.mxu0 %v421
    %442 = vmatprep.subr.bf16.mxu0 0
    %443 = vmatpush1.bf16.msra.mxu0 %v422
    %444 = vmatprep.subr.bf16.mxu0 0
    %445 = vmatpush1.bf16.msra.mxu0 %v423
    %446 = vmatprep.subr.bf16.mxu0 0
    %447 = vmatpush1.bf16.msra.mxu0 %v424
    %448 = vmatprep.subr.bf16.mxu0 0
    %449 = vmatpush1.bf16.msra.mxu0 %v425
    %450 = vmatprep.subr.bf16.mxu0 0
    %451 = vmatpush1.bf16.msra.mxu0 0
    %452 = vmatprep.subr.bf16.mxu0 0
    %453 = vmatpush1.bf16.msra.mxu0 0
    %454 = vmatprep.subr.bf16.mxu0 0
    %455 = vmatpush1.bf16.msra.mxu0 0
    %456 = vmatprep.subr.bf16.mxu0 0
    %457 = vmatpush1.bf16.msra.mxu0 0
    %458 = vmatprep.subr.bf16.mxu0 0
    %459 = vmatpush1.bf16.msra.mxu0 0
    %460 = vmatprep.subr.bf16.mxu0 0
    %461 = vmatpush1.bf16.msra.mxu0 0
    %462 = vmatprep.subr.bf16.mxu0 0
    %463 = vmatpush1.bf16.msra.mxu0 0
    %464 = vmatprep.subr.bf16.mxu0 0
    %465 = vmatpush1.bf16.msra.mxu0 0
    %466 = vmatprep.mubr.bf16.mxu0 0
    %467 = vmatmul.mubr.bf16.gmra.mrb[0].mxu0 %v362
    %v468 = vpop.f32.mrb[0].mxu0
    %v469 = vadd.f32 %v384, %v468
    %v470 = vpop.f32.mrb[0].mxu0
    %v471 = vpop.f32.mrb[0].mxu0
    %v472 = vpop.f32.mrb[0].mxu0
    %473 = vdwg.mxu0
    %v474 = vmax.f32 %v469, 0.0
    %v475 = vsel %vm283, %v474, 0.0
    %476 = vadd.xlane.f32.xlu0 %v475
    %v477 = vpop.xlane.xlu0 %476
    %v478 = vmul.f32 %v477, %v287
    %v479 = vmul.f32 %v474, %v474
    %v480 = vsel %vm283, %v479, 0.0
    %481 = vadd.xlane.f32.xlu0 %v480
    %v482 = vpop.xlane.xlu0 %481
    %v483 = vmul.f32 %v482, %v287
    %v484 = vmul.f32 %v478, %v478
    %v485 = vsub.f32 %v483, %v484
    %v486 = vsub.f32 %v474, %v478
    %v487 = vadd.f32 %v485, 1e-05
    %v488 = vrsqrt.pop %v487
    %v489 = vmul.f32 %v486, %v488
    %v490 = vld [vmem:[#allocation9] sm:$0x1]
    %v492 = vlaneseq
    %v493 = vshrl.u32 %v492, 7
    %v494 = vsub.s32 0, %v493
    %v495 = vrot.slane %v490, %v494
    %v497 = vmul.f32 %v489, %v495
    %v498 = vld [vmem:[#allocation10] sm:$0x1]
    %v500 = vlaneseq
    %v501 = vshrl.u32 %v500, 7
    %v502 = vsub.s32 0, %v501
    %v503 = vrot.slane %v498, %v502
    %v505 = vadd.f32 %v497, %v503
    %v506 = vpack.c.bf16 %v505, %v505
    %v509 = vunpack.c.l.s4 1966171168
    %v510 = vunpack.c.0.s8 %v509
    %v511 = vlaneseq
    %v512 = vshrl.u32 %v511, 7
    %v513 = vsub.s32 %v510, %v512
    %v514 = vrot.slane %v506, %v513
    %v516 = vunpack.c.l.s4 1966171168
    %v517 = vunpack.c.0.s8 %v516
    %v518 = vlaneseq
    %v519 = vshrl.u32 %v518, 7
    %v520 = vsub.s32 %v517, %v519
    %v521 = vrot.slane %v514, %v520
    %v522 = vunpack.i.l.s16 %v521
    %v523 = vunpack.i.h.s16 %v521
    %v524 = vpack.i.b16 %v522, %v522
    %v525 = vpack.i.b16 %v523, %v523
    %v527 = vunpack.c.l.s4 857870592
    %v528 = vunpack.c.0.s8 %v527
    %v529 = vlaneseq
    %v530 = vshrl.u32 %v529, 7
    %v531 = vsub.s32 %v528, %v530
    %v532 = vrot.slane %v524, %v531
    %v534 = vunpack.c.l.s4 857870592
    %v535 = vunpack.c.0.s8 %v534
    %v536 = vlaneseq
    %v537 = vshrl.u32 %v536, 7
    %v538 = vsub.s32 %v535, %v537
    %v539 = vrot.slane %v525, %v538
    %vm542 = vsmask.f32 7938
    %vm543 = vmand %vm352, %vm542
    %v544 = vld [vmem:[%s15] sm:$0x1]
    %v545 = vsel %vm543, %v532, %v544
    %546 = vst [vmem:[%s15] sm:$0x1] %v545
    %v547 = vld [vmem:[%s15 + $0x2] sm:$0x1]
    %v548 = vsel %vm543, %v539, %v547
    %549 = vst [vmem:[%s15 + $0x2] sm:$0x1] %v548
    %v550 = vld [vmem:[%s0] sm:$0xf]
    %v553 = vunpack.c.l.s4 1983009808
    %v554 = vunpack.c.0.s8 %v553
    %v555 = vlaneseq
    %v556 = vshrl.u32 %v555, 7
    %v557 = vsub.s32 %v554, %v556
    %v558 = vrot.slane %v550, %v557
    %v559 = vcombine.high %v558, %v558
    %v562 = vpack.c.bf16 %v558, %v558
    %v563 = vpack.c.bf16 %v559, %v559
    %v564 = vld [vmem:[%s3] sm:$0xf]
    %v565 = vld [vmem:[%s3 + $0x4] sm:$0xf]
    %v566 = vld [vmem:[%s3 + $0x8] sm:$0xf]
    %v567 = vld [vmem:[%s3 + $0xc] sm:$0xf]
    %v568 = vld [vmem:[%s3 + $0x10] sm:$0xf]
    %v569 = vld [vmem:[%s3 + $0x14] sm:$0xf]
    %v570 = vld [vmem:[%s3 + $0x18] sm:$0xf]
    %v571 = vld [vmem:[%s3 + $0x1c] sm:$0xf]
    %v572 = vld [vmem:[%s3 + $0x20] sm:$0xf]
    %v573 = vld [vmem:[%s3 + $0x24] sm:$0xf]
    %v574 = vld [vmem:[%s3 + $0x28] sm:$0xf]
    %v575 = vld [vmem:[%s3 + $0x2c] sm:$0xf]
    %v576 = vld [vmem:[%s3 + $0x30] sm:$0xf]
    %v577 = vld [vmem:[%s3 + $0x34] sm:$0xf]
    %v578 = vld [vmem:[%s3 + $0x38] sm:$0xf]
    %v579 = vld [vmem:[%s3 + $0x3c] sm:$0xf]
    %v580 = vld [vmem:[%s3 + $0x40] sm:$0xf]
    %v581 = vld [vmem:[%s3 + $0x44] sm:$0xf]
    %v582 = vld [vmem:[%s3 + $0x48] sm:$0xf]
    %v583 = vld [vmem:[%s3 + $0x4c] sm:$0xf]
    %v584 = vld [vmem:[%s3 + $0x50] sm:$0xf]
    %v585 = vld [vmem:[%s3 + $0x54] sm:$0xf]
    %v586 = vld [vmem:[%s3 + $0x58] sm:$0xf]
    %v587 = vld [vmem:[%s3 + $0x5c] sm:$0xf]
    %v588 = vld [vmem:[%s3 + $0x60] sm:$0xf]
    %v589 = vld [vmem:[%s3 + $0x64] sm:$0xf]
    %v590 = vld [vmem:[%s3 + $0x68] sm:$0xf]
    %v591 = vld [vmem:[%s3 + $0x6c] sm:$0xf]
    %v592 = vld [vmem:[%s3 + $0x70] sm:$0xf]
    %v593 = vld [vmem:[%s3 + $0x74] sm:$0xf]
    %v594 = vld [vmem:[%s3 + $0x78] sm:$0xf]
    %v595 = vld [vmem:[%s3 + $0x7c] sm:$0xf]
    %v596 = vld [vmem:[#allocation2] sm:$0x1]
    %v598 = vlaneseq
    %v599 = vshrl.u32 %v598, 7
    %v600 = vsub.s32 0, %v599
    %v601 = vrot.slane %v596, %v600
    %v635 = vunpack.c.l.b16 %v564
    %v636 = vunpack.c.l.b16 %v565
    %v637 = vunpack.c.l.b16 %v566
    %v638 = vunpack.c.l.b16 %v567
    %v639 = vunpack.c.l.b16 %v568
    %v640 = vunpack.c.l.b16 %v569
    %v641 = vunpack.c.l.b16 %v570
    %v642 = vunpack.c.l.b16 %v571
    %v643 = vunpack.c.l.b16 %v572
    %v644 = vunpack.c.l.b16 %v573
    %v645 = vunpack.c.l.b16 %v574
    %v646 = vunpack.c.l.b16 %v575
    %v647 = vunpack.c.l.b16 %v576
    %v648 = vunpack.c.l.b16 %v577
    %v649 = vunpack.c.l.b16 %v578
    %v650 = vunpack.c.l.b16 %v579
    %v651 = vunpack.c.l.b16 %v580
    %v652 = vunpack.c.l.b16 %v581
    %v653 = vunpack.c.l.b16 %v582
    %v654 = vunpack.c.l.b16 %v583
    %v655 = vunpack.c.l.b16 %v584
    %v656 = vunpack.c.l.b16 %v585
    %v657 = vunpack.c.l.b16 %v586
    %v658 = vunpack.c.l.b16 %v587
    %v659 = vunpack.c.l.b16 %v588
    %v660 = vunpack.c.l.b16 %v589
    %v661 = vunpack.c.l.b16 %v590
    %v662 = vunpack.c.l.b16 %v591
    %v663 = vunpack.c.l.b16 %v592
    %v664 = vunpack.c.l.b16 %v593
    %v665 = vunpack.c.l.b16 %v594
    %v666 = vunpack.c.l.b16 %v595
    %v667 = vpack.c.b16 %v636, %v635
    %v668 = vpack.c.b16 %v638, %v637
    %v669 = vpack.c.b16 %v640, %v639
    %v670 = vpack.c.b16 %v642, %v641
    %v671 = vpack.c.b16 %v644, %v643
    %v672 = vpack.c.b16 %v646, %v645
    %v673 = vpack.c.b16 %v648, %v647
    %v674 = vpack.c.b16 %v650, %v649
    %v675 = vpack.c.b16 %v652, %v651
    %v676 = vpack.c.b16 %v654, %v653
    %v677 = vpack.c.b16 %v656, %v655
    %v678 = vpack.c.b16 %v658, %v657
    %v679 = vpack.c.b16 %v660, %v659
    %v680 = vpack.c.b16 %v662, %v661
    %v681 = vpack.c.b16 %v664, %v663
    %v682 = vpack.c.b16 %v666, %v665
    %699 = vmatprep.subr.bf16.mxu0 0
    %700 = vmatpush1.bf16.msra.mxu0 %v667
    %701 = vmatprep.subr.bf16.mxu0 0
    %702 = vmatpush1.bf16.msra.mxu0 %v668
    %703 = vmatprep.subr.bf16.mxu0 0
    %704 = vmatpush1.bf16.msra.mxu0 %v669
    %705 = vmatprep.subr.bf16.mxu0 0
    %706 = vmatpush1.bf16.msra.mxu0 %v670
    %707 = vmatprep.subr.bf16.mxu0 0
    %708 = vmatpush1.bf16.msra.mxu0 %v671
    %709 = vmatprep.subr.bf16.mxu0 0
    %710 = vmatpush1.bf16.msra.mxu0 %v672
    %711 = vmatprep.subr.bf16.mxu0 0
    %712 = vmatpush1.bf16.msra.mxu0 %v673
    %713 = vmatprep.subr.bf16.mxu0 0
    %714 = vmatpush1.bf16.msra.mxu0 %v674
    %715 = vmatprep.subr.bf16.mxu0 0
    %716 = vmatpush1.bf16.msra.mxu0 %v675
    %717 = vmatprep.subr.bf16.mxu0 0
    %718 = vmatpush1.bf16.msra.mxu0 %v676
    %719 = vmatprep.subr.bf16.mxu0 0
    %720 = vmatpush1.bf16.msra.mxu0 %v677
    %721 = vmatprep.subr.bf16.mxu0 0
    %722 = vmatpush1.bf16.msra.mxu0 %v678
    %723 = vmatprep.subr.bf16.mxu0 0
    %724 = vmatpush1.bf16.msra.mxu0 %v679
    %725 = vmatprep.subr.bf16.mxu0 0
    %726 = vmatpush1.bf16.msra.mxu0 %v680
    %727 = vmatprep.subr.bf16.mxu0 0
    %728 = vmatpush1.bf16.msra.mxu0 %v681
    %729 = vmatprep.subr.bf16.mxu0 0
    %730 = vmatpush1.bf16.msra.mxu0 %v682
    %731 = vmatprep.mubr.bf16.mxu0 %v563
    %732 = vmatmul.mubr.bf16.gmra.mrb[0].mxu0 %v562
    %v733 = vpop.f32.mrb[0].mxu0
    %v734 = vadd.f32 %v601, %v733
    %v735 = vpop.f32.mrb[0].mxu0
    %v736 = vpop.f32.mrb[0].mxu0
    %v737 = vpop.f32.mrb[0].mxu0
    %738 = vdwg.mxu0
    %v739 = vmax.f32 %v734, 0.0
    %v740 = vsel %vm283, %v739, 0.0
    %741 = vadd.xlane.f32.xlu0 %v740
    %v742 = vpop.xlane.xlu0 %741
    %v743 = vmul.f32 %v742, %v287
    %v744 = vmul.f32 %v739, %v739
    %v745 = vsel %vm283, %v744, 0.0
    %746 = vadd.xlane.f32.xlu0 %v745
    %v747 = vpop.xlane.xlu0 %746
    %v748 = vmul.f32 %v747, %v287
    %v749 = vmul.f32 %v743, %v743
    %v750 = vsub.f32 %v748, %v749
    %v751 = vsub.f32 %v739, %v743
    %v752 = vadd.f32 %v750, 1e-05
    %v753 = vrsqrt.pop %v752
    %v754 = vmul.f32 %v751, %v753
    %v755 = vld [vmem:[#allocation4] sm:$0x1]
    %v757 = vlaneseq
    %v758 = vshrl.u32 %v757, 7
    %v759 = vsub.s32 0, %v758
    %v760 = vrot.slane %v755, %v759
    %v762 = vmul.f32 %v754, %v760
    %v763 = vld [vmem:[#allocation6] sm:$0x1]
    %v765 = vlaneseq
    %v766 = vshrl.u32 %v765, 7
    %v767 = vsub.s32 0, %v766
    %v768 = vrot.slane %v763, %v767
    %v770 = vadd.f32 %v762, %v768
    %v771 = vpack.c.bf16 %v770, %v770
    %v774 = vunpack.c.l.s4 1966171168
    %v775 = vunpack.c.0.s8 %v774
    %v776 = vlaneseq
    %v777 = vshrl.u32 %v776, 7
    %v778 = vsub.s32 %v775, %v777
    %v779 = vrot.slane %v771, %v778
    %v781 = vunpack.c.l.s4 1966171168
    %v782 = vunpack.c.0.s8 %v781
    %v783 = vlaneseq
    %v784 = vshrl.u32 %v783, 7
    %v785 = vsub.s32 %v782, %v784
    %v786 = vrot.slane %v779, %v785
    %v787 = vunpack.i.l.s16 %v786
    %v788 = vunpack.i.h.s16 %v786
    %v789 = vpack.i.b16 %v787, %v787
    %v790 = vpack.i.b16 %v788, %v788
    %v792 = vunpack.c.l.s4 857870592
    %v793 = vunpack.c.0.s8 %v792
    %v794 = vlaneseq
    %v795 = vshrl.u32 %v794, 7
    %v796 = vsub.s32 %v793, %v795
    %v797 = vrot.slane %v789, %v796
    %v799 = vunpack.c.l.s4 857870592
    %v800 = vunpack.c.0.s8 %v799
    %v801 = vlaneseq
    %v802 = vshrl.u32 %v801, 7
    %v803 = vsub.s32 %v800, %v802
    %v804 = vrot.slane %v790, %v803
    %vm807 = vcmask 1041409
    %vm808 = vsmask.f32 1280
    %vm809 = vmand %vm807, %vm808
    %v810 = vld [vmem:[%s15] sm:$0x2]
    %v811 = vsel %vm809, %v797, %v810
    %812 = vst [vmem:[%s15] sm:$0x2] %v811
    %v813 = vld [vmem:[%s15 + $0x2] sm:$0x2]
    %v814 = vsel %vm809, %v804, %v813
    %815 = vst [vmem:[%s15 + $0x2] sm:$0x2] %v814
    // Predicated region
    $region102: #{multimodal_llm_forward.6} parent=1 // pred_check
      _
    $region103: #{multimodal_llm_forward.6} parent=1 // pred_check_branch
      %817 = sbr.rel (0) target = $region105
    $region104: #{multimodal_llm_forward.6} parent=1 // pred_region
      _
    $region105: #{multimodal_llm_forward.6} parent=1 // pred_fallthru
      _
    // Predicated region
    $region106: #{multimodal_llm_forward.6} parent=1 // pred_check
      _
    $region107: #{multimodal_llm_forward.6} parent=1 // pred_check_branch
      %819 = sbr.rel (0) target = $region109
    $region108: #{multimodal_llm_forward.6} parent=1 // pred_region
      _
    $region109: #{multimodal_llm_forward.6} parent=1 // pred_fallthru
      _
    %820 = vsyncpa [#allocation3], 1
    %821 = vsyncpa [#allocation5], 1
    %822 = vsyncpa [#allocation8], 1
    %823 = vsyncpa [#allocation11], 1
    %824 = vsyncpa [#allocation14], 1
    %825 = vsyncpa [#allocation17], 1

</llo_original>
